<compile_context>
chip_gen: v7x
topology: tpu7x:2x2x1
jax: 0.10.0
libtpu: 0.0.40
codegen_flags: <defaults>
</compile_context>

<pallas_src>
import jax
import jax.numpy as jnp
import numpy as np
from jax.experimental import pallas as pl
from jax.experimental.pallas import tpu as pltpu


# --------------------------- small helpers ---------------------------------

def _round_up(x, m):
    return (x + m - 1) // m * m


_VMEM_TILE_BUDGET = 40 * 1024 * 1024   # conservative: fits v7x's 64 MiB VMEM


def _choose_p_tile(i_pad, o_pad, p, max_tile=2048):
    """Largest lane-tile (multiple of 128, <= max_tile) whose resident VMEM
    (single/double-buffered weights + double-buffered x/out, f32) stays within
    the budget."""
    # bytes per lane column: weights (I*O * re/im * 2 buffers, worst case) +
    # x (I * re/im * 2 buffers) + out (O * re/im * 2 buffers)
    per_lane = 4 * (i_pad * o_pad * 2 * 2 + i_pad * 2 * 2 + o_pad * 2 * 2)
    budget_lanes = max(128, (_VMEM_TILE_BUDGET // per_lane) // 128 * 128)
    return int(min(max_tile, budget_lanes, _round_up(p, 128)))


# ----------------------------- Pallas kernel --------------------------------

def _spectral_mix_kernel(xr_ref, xi_ref, wr_ref, wi_ref, outr_ref, outi_ref):
    """One (P-tile, batch) grid step.

    Block shapes (batch dim squeezed out of x / out):
      x*_ref  : (I, Pt)     real / imag parts of the selected Fourier modes
      w*_ref  : (I, O, Pt)  real / imag parts of the weights
      out*_ref: (O, Pt)

    out[o, p] = sum_i x[i, p] * w[i, o, p] (complex arithmetic), accumulated
    over the in-channel axis -- live state is only the two (O, Pt) accumulators
    instead of four (I, O, Pt) broadcast temporaries.
    """
    num_i = wr_ref.shape[0]            # static (from the block shape)

    acc_r = jnp.zeros(outr_ref.shape, jnp.float32)
    acc_i = jnp.zeros(outi_ref.shape, jnp.float32)

    # Static trip count -> plain Python loop (fully unrolled, static slices).
    for i in range(num_i):
        xr = xr_ref[pl.ds(i, 1), :].astype(jnp.float32)   # (1, Pt), sublane bcast
        xi = xi_ref[pl.ds(i, 1), :].astype(jnp.float32)
        wr = wr_ref[i].astype(jnp.float32)                # (O, Pt)
        wi = wi_ref[i].astype(jnp.float32)
        acc_r = acc_r + xr * wr - xi * wi
        acc_i = acc_i + xr * wi + xi * wr

    outr_ref[...] = acc_r
    outi_ref[...] = acc_i


def _build_spectral_mix(batch, i_pad, o_pad, p_pad, p_tile,
                        single_buffer_weights, w_dtype):
    n_p = p_pad // p_tile

    # Grid: P-tiles outer, batch inner -> the weight block index is constant
    # across the inner axis (re-used, not re-fetched), and both axes are
    # independent ("parallel") so they can shard across TensorCores.
    x_spec = pl.BlockSpec((None, i_pad, p_tile), lambda p, b: (b, 0, p))
    o_spec = pl.BlockSpec((None, o_pad, p_tile), lambda p, b: (b, 0, p))
    if single_buffer_weights:
        # Weights only change on the outer axis -> double-buffering them is
        # pure VMEM waste; single-buffer to halve the dominant resident tile.
        w_spec = pl.BlockSpec((i_pad, o_pad, p_tile), lambda p, b: (0, 0, p),
                              pipeline_mode=pl.Buffered(1))
    else:
        w_spec = pl.BlockSpec((i_pad, o_pad, p_tile), lambda p, b: (0, 0, p))

    return pl.pallas_call(
        _spectral_mix_kernel,
        out_shape=(jax.ShapeDtypeStruct((batch, o_pad, p_pad), jnp.float32),
                   jax.ShapeDtypeStruct((batch, o_pad, p_pad), jnp.float32)),
        grid_spec=pltpu.PrefetchScalarGridSpec(
            num_scalar_prefetch=0,
            grid=(n_p, batch),
            in_specs=[x_spec, x_spec, w_spec, w_spec],
            out_specs=[o_spec, o_spec],
        ),
        compiler_params=pltpu.CompilerParams(
            dimension_semantics=("parallel", "parallel"),
            vmem_limit_bytes=48 * 1024 * 1024,
        ),
    )


def spectral_mix(x_r, x_i, w_r, w_i, weight_dtype=jnp.float32):
    """Complex per-mode channel mixing.

    x_*: (B, I, P) float32, w_*: (I, O, P) -> (out_r, out_i): (B, O, P) float32
    out[b, o, p] = sum_i x[b, i, p] * w[i, o, p]   (complex arithmetic)

    weight_dtype: set to jnp.bfloat16 on v6e/v7x to halve weight HBM traffic /
    VMEM (accumulation stays f32 in-kernel).  Keep f32 on v5e (no bf16 VPU;
    bf16 there is only a storage/DMA win, still upcast in-kernel).
    """
    B, I, P = x_r.shape
    O = w_r.shape[1]

    # Pad channels to sublane multiples (8) and P to a lane-dense tile.
    i_pad = _round_up(max(I, 1), 8)
    o_pad = _round_up(max(O, 1), 8)
    p_tile = _choose_p_tile(i_pad, o_pad, P)
    p_pad = _round_up(P, p_tile)

    def pad3(a, d0, d1, d2):
        return jnp.pad(a, ((0, d0 - a.shape[0]),
                           (0, d1 - a.shape[1]),
                           (0, d2 - a.shape[2])))

    xr = pad3(x_r.astype(jnp.float32), B, i_pad, p_pad)
    xi = pad3(x_i.astype(jnp.float32), B, i_pad, p_pad)
    wr = pad3(w_r.astype(weight_dtype), i_pad, o_pad, p_pad)
    wi = pad3(w_i.astype(weight_dtype), i_pad, o_pad, p_pad)

    try:
        fn = _build_spectral_mix(B, i_pad, o_pad, p_pad, p_tile,
                                 single_buffer_weights=True, w_dtype=weight_dtype)
        out_r, out_i = fn(xr, xi, wr, wi)
    except Exception:
        # Fallback (identical kernel) if this JAX build rejects pipeline_mode.
        fn = _build_spectral_mix(B, i_pad, o_pad, p_pad, p_tile,
                                 single_buffer_weights=False, w_dtype=weight_dtype)
        out_r, out_i = fn(xr, xi, wr, wi)

    return out_r[:, :O, :P], out_i[:, :O, :P]


# ---------------------------- Module forward ---------------------------------

def spectral_conv2d(x, weights1, weights2, modes1, modes2,
                    weight_dtype=jnp.float32):
    """Forward pass of SpectralConv2d.

    x:        (B, C_in, V, H, W)  float32
    weights*: (C_in, C_out, V, modes1, modes2)  complex64
    returns:  (B, C_out, V, H, W) float32
    """
    B, Cin, V, H, W = x.shape
    Cout = weights1.shape[1]
    Wf = W // 2 + 1

    # TODO(synk): rfft2/irfft2 have no Pallas primitive; FFT glue stays in XLA.
    x_ft = jnp.fft.rfft2(x, axes=(-2, -1)).astype(jnp.complex64)   # (B,Cin,V,H,Wf)

    lo = x_ft[:, :, :, :modes1, :modes2]          # (B,Cin,V,m1,m2)
    hi = x_ft[:, :, :, H - modes1:, :modes2]      # (B,Cin,V,m1,m2)

    half = V * modes1 * modes2
    x_sel = jnp.concatenate(
        [lo.reshape(B, Cin, half), hi.reshape(B, Cin, half)], axis=-1)   # (B,Cin,P)
    w_sel = jnp.concatenate(
        [weights1.reshape(Cin, Cout, half),
         weights2.reshape(Cin, Cout, half)], axis=-1)                    # (Cin,Cout,P)

    out_r, out_i = spectral_mix(
        jnp.real(x_sel), jnp.imag(x_sel),
        jnp.real(w_sel).astype(jnp.float32),
        jnp.imag(w_sel).astype(jnp.float32),
        weight_dtype=weight_dtype,
    )
    out_sel = (out_r + 1j * out_i).astype(jnp.complex64)                 # (B,Cout,P)

    out_lo = out_sel[:, :, :half].reshape(B, Cout, V, modes1, modes2)
    out_hi = out_sel[:, :, half:].reshape(B, Cout, V, modes1, modes2)

    out_ft = jnp.zeros((B, Cout, V, H, Wf), dtype=jnp.complex64)
    out_ft = out_ft.at[:, :, :, :modes1, :modes2].set(out_lo)
    out_ft = out_ft.at[:, :, :, H - modes1:, :modes2].set(out_hi)

    return jnp.fft.irfft2(out_ft, s=(H, W), axes=(-2, -1)).astype(jnp.float32)


# ------------------------- Pure-JAX reference --------------------------------

def spectral_conv2d_ref(x, weights1, weights2, modes1, modes2):
    B, Cin, V, H, W = x.shape
    Cout = weights1.shape[1]
    Wf = W // 2 + 1
    x_ft = jnp.fft.rfft2(x, axes=(-2, -1)).astype(jnp.complex64)
    out_ft = jnp.zeros((B, Cout, V, H, Wf), dtype=jnp.complex64)
    out_ft = out_ft.at[:, :, :, :modes1, :modes2].set(
        jnp.einsum('bivxy,iovxy->bovxy',
                   x_ft[:, :, :, :modes1, :modes2], weights1))
    out_ft = out_ft.at[:, :, :, H - modes1:, :modes2].set(
        jnp.einsum('bivxy,iovxy->bovxy',
                   x_ft[:, :, :, H - modes1:, :modes2], weights2))
    return jnp.fft.irfft2(out_ft, s=(H, W), axes=(-2, -1)).astype(jnp.float32)


# --------------------------------- main ---------------------------------------

if __name__ == "__main__":
    # small shapes consistent with the module
    B, Cin, Cout, V, H, W = 2, 4, 4, 3, 16, 16
    modes1, modes2 = 4, 4
    scale = 1.0 / Cin

    key = jax.random.PRNGKey(0)
    kx, kw1r, kw1i, kw2r, kw2i = jax.random.split(key, 5)

    x = jax.random.normal(kx, (B, Cin, V, H, W), dtype=jnp.float32)

    # torch.rand(..., dtype=cfloat) -> real & imag parts each uniform [0, 1)
    w1 = scale * (jax.random.uniform(kw1r, (Cin, Cout, V, modes1, modes2))
                  + 1j * jax.random.uniform(kw1i, (Cin, Cout, V, modes1, modes2))
                  ).astype(jnp.complex64)
    w2 = scale * (jax.random.uniform(kw2r, (Cin, Cout, V, modes1, modes2))
                  + 1j * jax.random.uniform(kw2i, (Cin, Cout, V, modes1, modes2))
                  ).astype(jnp.complex64)

    out = spectral_conv2d(x, w1, w2, modes1, modes2)
    out = jax.block_until_ready(out)

    ref = spectral_conv2d_ref(x, w1, w2, modes1, modes2)
    ref = jax.block_until_ready(ref)

    assert out.shape == (B, Cout, V, H, W), out.shape
    np.testing.assert_allclose(np.asarray(out), np.asarray(ref),
                               rtol=1e-4, atol=1e-5)

    print("KERNEL_OK")
</pallas_src>

<mosaic_0001>
module attributes {stable_mosaic.version = 11 : i64} {
  func.func @_spectral_mix_kernel(%arg0: i32, %arg1: i32, %arg2: memref<1x8x128xf32, #tpu.memory_space<vmem>>, %arg3: memref<1x8x128xf32, #tpu.memory_space<vmem>>, %arg4: memref<8x8x128xf32, #tpu.memory_space<vmem>>, %arg5: memref<8x8x128xf32, #tpu.memory_space<vmem>>, %arg6: memref<1x8x128xf32, #tpu.memory_space<vmem>>, %arg7: memref<1x8x128xf32, #tpu.memory_space<vmem>>) attributes {dimension_semantics = [#tpu.dimension_semantics<parallel>, #tpu.dimension_semantics<parallel>], iteration_bounds = array<i64: 1, 2>, scalar_prefetch = 0 : i64, scratch_operands = 0 : i64, tpu.core_type = #tpu.core_type<tc>, window_params = [{transform_indices = @transform_0, window_bounds = array<i64: 1, 8, 128>}, {transform_indices = @transform_1, window_bounds = array<i64: 1, 8, 128>}, {pipeline_mode = #tpu.pipeline_mode<synchronous>, transform_indices = @transform_2, window_bounds = array<i64: 8, 8, 128>}, {pipeline_mode = #tpu.pipeline_mode<synchronous>, transform_indices = @transform_3, window_bounds = array<i64: 8, 8, 128>}, {transform_indices = @transform_4, window_bounds = array<i64: 1, 8, 128>}, {transform_indices = @transform_5, window_bounds = array<i64: 1, 8, 128>}]} {
    %cst = arith.constant 0.000000e+00 : f32
    %0 = vector.broadcast %cst : f32 to vector<8x128xf32>
    %cst_0 = arith.constant 0.000000e+00 : f32
    %1 = vector.broadcast %cst_0 : f32 to vector<8x128xf32>
    %c0 = arith.constant 0 : index
    %c0_1 = arith.constant 0 : index
    %c0_2 = arith.constant 0 : index
    %2 = vector.load %arg2[%c0, %c0_1, %c0_2] : memref<1x8x128xf32, #tpu.memory_space<vmem>>, vector<1x1x128xf32>
    %3 = vector.shape_cast %2 : vector<1x1x128xf32> to vector<1x128xf32>
    %c0_3 = arith.constant 0 : index
    %c0_4 = arith.constant 0 : index
    %c0_5 = arith.constant 0 : index
    %4 = vector.load %arg3[%c0_3, %c0_4, %c0_5] : memref<1x8x128xf32, #tpu.memory_space<vmem>>, vector<1x1x128xf32>
    %5 = vector.shape_cast %4 : vector<1x1x128xf32> to vector<1x128xf32>
    %c0_6 = arith.constant 0 : index
    %c0_7 = arith.constant 0 : index
    %c0_8 = arith.constant 0 : index
    %6 = vector.load %arg4[%c0_6, %c0_7, %c0_8] : memref<8x8x128xf32, #tpu.memory_space<vmem>>, vector<1x8x128xf32>
    %7 = vector.shape_cast %6 : vector<1x8x128xf32> to vector<8x128xf32>
    %c0_9 = arith.constant 0 : index
    %c0_10 = arith.constant 0 : index
    %c0_11 = arith.constant 0 : index
    %8 = vector.load %arg5[%c0_9, %c0_10, %c0_11] : memref<8x8x128xf32, #tpu.memory_space<vmem>>, vector<1x8x128xf32>
    %9 = vector.shape_cast %8 : vector<1x8x128xf32> to vector<8x128xf32>
    %10 = vector.broadcast %3 : vector<1x128xf32> to vector<8x128xf32>
    %11 = arith.mulf %10, %7 : vector<8x128xf32>
    %12 = arith.addf %0, %11 : vector<8x128xf32>
    %13 = vector.broadcast %5 : vector<1x128xf32> to vector<8x128xf32>
    %14 = arith.mulf %13, %9 : vector<8x128xf32>
    %15 = arith.subf %12, %14 : vector<8x128xf32>
    %16 = vector.broadcast %3 : vector<1x128xf32> to vector<8x128xf32>
    %17 = arith.mulf %16, %9 : vector<8x128xf32>
    %18 = arith.addf %1, %17 : vector<8x128xf32>
    %19 = vector.broadcast %5 : vector<1x128xf32> to vector<8x128xf32>
    %20 = arith.mulf %19, %7 : vector<8x128xf32>
    %21 = arith.addf %18, %20 : vector<8x128xf32>
    %c0_12 = arith.constant 0 : index
    %c1 = arith.constant 1 : index
    %c0_13 = arith.constant 0 : index
    %22 = vector.load %arg2[%c0_12, %c1, %c0_13] : memref<1x8x128xf32, #tpu.memory_space<vmem>>, vector<1x1x128xf32>
    %23 = vector.shape_cast %22 : vector<1x1x128xf32> to vector<1x128xf32>
    %c0_14 = arith.constant 0 : index
    %c1_15 = arith.constant 1 : index
    %c0_16 = arith.constant 0 : index
    %24 = vector.load %arg3[%c0_14, %c1_15, %c0_16] : memref<1x8x128xf32, #tpu.memory_space<vmem>>, vector<1x1x128xf32>
    %25 = vector.shape_cast %24 : vector<1x1x128xf32> to vector<1x128xf32>
    %c1_17 = arith.constant 1 : index
    %c0_18 = arith.constant 0 : index
    %c0_19 = arith.constant 0 : index
    %26 = vector.load %arg4[%c1_17, %c0_18, %c0_19] : memref<8x8x128xf32, #tpu.memory_space<vmem>>, vector<1x8x128xf32>
    %27 = vector.shape_cast %26 : vector<1x8x128xf32> to vector<8x128xf32>
    %c1_20 = arith.constant 1 : index
    %c0_21 = arith.constant 0 : index
    %c0_22 = arith.constant 0 : index
    %28 = vector.load %arg5[%c1_20, %c0_21, %c0_22] : memref<8x8x128xf32, #tpu.memory_space<vmem>>, vector<1x8x128xf32>
    %29 = vector.shape_cast %28 : vector<1x8x128xf32> to vector<8x128xf32>
    %30 = vector.broadcast %23 : vector<1x128xf32> to vector<8x128xf32>
    %31 = arith.mulf %30, %27 : vector<8x128xf32>
    %32 = arith.addf %15, %31 : vector<8x128xf32>
    %33 = vector.broadcast %25 : vector<1x128xf32> to vector<8x128xf32>
    %34 = arith.mulf %33, %29 : vector<8x128xf32>
    %35 = arith.subf %32, %34 : vector<8x128xf32>
    %36 = vector.broadcast %23 : vector<1x128xf32> to vector<8x128xf32>
    %37 = arith.mulf %36, %29 : vector<8x128xf32>
    %38 = arith.addf %21, %37 : vector<8x128xf32>
    %39 = vector.broadcast %25 : vector<1x128xf32> to vector<8x128xf32>
    %40 = arith.mulf %39, %27 : vector<8x128xf32>
    %41 = arith.addf %38, %40 : vector<8x128xf32>
    %c0_23 = arith.constant 0 : index
    %c2 = arith.constant 2 : index
    %c0_24 = arith.constant 0 : index
    %42 = vector.load %arg2[%c0_23, %c2, %c0_24] : memref<1x8x128xf32, #tpu.memory_space<vmem>>, vector<1x1x128xf32>
    %43 = vector.shape_cast %42 : vector<1x1x128xf32> to vector<1x128xf32>
    %c0_25 = arith.constant 0 : index
    %c2_26 = arith.constant 2 : index
    %c0_27 = arith.constant 0 : index
    %44 = vector.load %arg3[%c0_25, %c2_26, %c0_27] : memref<1x8x128xf32, #tpu.memory_space<vmem>>, vector<1x1x128xf32>
    %45 = vector.shape_cast %44 : vector<1x1x128xf32> to vector<1x128xf32>
    %c2_28 = arith.constant 2 : index
    %c0_29 = arith.constant 0 : index
    %c0_30 = arith.constant 0 : index
    %46 = vector.load %arg4[%c2_28, %c0_29, %c0_30] : memref<8x8x128xf32, #tpu.memory_space<vmem>>, vector<1x8x128xf32>
    %47 = vector.shape_cast %46 : vector<1x8x128xf32> to vector<8x128xf32>
    %c2_31 = arith.constant 2 : index
    %c0_32 = arith.constant 0 : index
    %c0_33 = arith.constant 0 : index
    %48 = vector.load %arg5[%c2_31, %c0_32, %c0_33] : memref<8x8x128xf32, #tpu.memory_space<vmem>>, vector<1x8x128xf32>
    %49 = vector.shape_cast %48 : vector<1x8x128xf32> to vector<8x128xf32>
    %50 = vector.broadcast %43 : vector<1x128xf32> to vector<8x128xf32>
    %51 = arith.mulf %50, %47 : vector<8x128xf32>
    %52 = arith.addf %35, %51 : vector<8x128xf32>
    %53 = vector.broadcast %45 : vector<1x128xf32> to vector<8x128xf32>
    %54 = arith.mulf %53, %49 : vector<8x128xf32>
    %55 = arith.subf %52, %54 : vector<8x128xf32>
    %56 = vector.broadcast %43 : vector<1x128xf32> to vector<8x128xf32>
    %57 = arith.mulf %56, %49 : vector<8x128xf32>
    %58 = arith.addf %41, %57 : vector<8x128xf32>
    %59 = vector.broadcast %45 : vector<1x128xf32> to vector<8x128xf32>
    %60 = arith.mulf %59, %47 : vector<8x128xf32>
    %61 = arith.addf %58, %60 : vector<8x128xf32>
    %c0_34 = arith.constant 0 : index
    %c3 = arith.constant 3 : index
    %c0_35 = arith.constant 0 : index
    %62 = vector.load %arg2[%c0_34, %c3, %c0_35] : memref<1x8x128xf32, #tpu.memory_space<vmem>>, vector<1x1x128xf32>
    %63 = vector.shape_cast %62 : vector<1x1x128xf32> to vector<1x128xf32>
    %c0_36 = arith.constant 0 : index
    %c3_37 = arith.constant 3 : index
    %c0_38 = arith.constant 0 : index
    %64 = vector.load %arg3[%c0_36, %c3_37, %c0_38] : memref<1x8x128xf32, #tpu.memory_space<vmem>>, vector<1x1x128xf32>
    %65 = vector.shape_cast %64 : vector<1x1x128xf32> to vector<1x128xf32>
    %c3_39 = arith.constant 3 : index
    %c0_40 = arith.constant 0 : index
    %c0_41 = arith.constant 0 : index
    %66 = vector.load %arg4[%c3_39, %c0_40, %c0_41] : memref<8x8x128xf32, #tpu.memory_space<vmem>>, vector<1x8x128xf32>
    %67 = vector.shape_cast %66 : vector<1x8x128xf32> to vector<8x128xf32>
    %c3_42 = arith.constant 3 : index
    %c0_43 = arith.constant 0 : index
    %c0_44 = arith.constant 0 : index
    %68 = vector.load %arg5[%c3_42, %c0_43, %c0_44] : memref<8x8x128xf32, #tpu.memory_space<vmem>>, vector<1x8x128xf32>
    %69 = vector.shape_cast %68 : vector<1x8x128xf32> to vector<8x128xf32>
    %70 = vector.broadcast %63 : vector<1x128xf32> to vector<8x128xf32>
    %71 = arith.mulf %70, %67 : vector<8x128xf32>
    %72 = arith.addf %55, %71 : vector<8x128xf32>
    %73 = vector.broadcast %65 : vector<1x128xf32> to vector<8x128xf32>
    %74 = arith.mulf %73, %69 : vector<8x128xf32>
    %75 = arith.subf %72, %74 : vector<8x128xf32>
    %76 = vector.broadcast %63 : vector<1x128xf32> to vector<8x128xf32>
    %77 = arith.mulf %76, %69 : vector<8x128xf32>
    %78 = arith.addf %61, %77 : vector<8x128xf32>
    %79 = vector.broadcast %65 : vector<1x128xf32> to vector<8x128xf32>
    %80 = arith.mulf %79, %67 : vector<8x128xf32>
    %81 = arith.addf %78, %80 : vector<8x128xf32>
    %c0_45 = arith.constant 0 : index
    %c4 = arith.constant 4 : index
    %c0_46 = arith.constant 0 : index
    %82 = vector.load %arg2[%c0_45, %c4, %c0_46] : memref<1x8x128xf32, #tpu.memory_space<vmem>>, vector<1x1x128xf32>
    %83 = vector.shape_cast %82 : vector<1x1x128xf32> to vector<1x128xf32>
    %c0_47 = arith.constant 0 : index
    %c4_48 = arith.constant 4 : index
    %c0_49 = arith.constant 0 : index
    %84 = vector.load %arg3[%c0_47, %c4_48, %c0_49] : memref<1x8x128xf32, #tpu.memory_space<vmem>>, vector<1x1x128xf32>
    %85 = vector.shape_cast %84 : vector<1x1x128xf32> to vector<1x128xf32>
    %c4_50 = arith.constant 4 : index
    %c0_51 = arith.constant 0 : index
    %c0_52 = arith.constant 0 : index
    %86 = vector.load %arg4[%c4_50, %c0_51, %c0_52] : memref<8x8x128xf32, #tpu.memory_space<vmem>>, vector<1x8x128xf32>
    %87 = vector.shape_cast %86 : vector<1x8x128xf32> to vector<8x128xf32>
    %c4_53 = arith.constant 4 : index
    %c0_54 = arith.constant 0 : index
    %c0_55 = arith.constant 0 : index
    %88 = vector.load %arg5[%c4_53, %c0_54, %c0_55] : memref<8x8x128xf32, #tpu.memory_space<vmem>>, vector<1x8x128xf32>
    %89 = vector.shape_cast %88 : vector<1x8x128xf32> to vector<8x128xf32>
    %90 = vector.broadcast %83 : vector<1x128xf32> to vector<8x128xf32>
    %91 = arith.mulf %90, %87 : vector<8x128xf32>
    %92 = arith.addf %75, %91 : vector<8x128xf32>
    %93 = vector.broadcast %85 : vector<1x128xf32> to vector<8x128xf32>
    %94 = arith.mulf %93, %89 : vector<8x128xf32>
    %95 = arith.subf %92, %94 : vector<8x128xf32>
    %96 = vector.broadcast %83 : vector<1x128xf32> to vector<8x128xf32>
    %97 = arith.mulf %96, %89 : vector<8x128xf32>
    %98 = arith.addf %81, %97 : vector<8x128xf32>
    %99 = vector.broadcast %85 : vector<1x128xf32> to vector<8x128xf32>
    %100 = arith.mulf %99, %87 : vector<8x128xf32>
    %101 = arith.addf %98, %100 : vector<8x128xf32>
    %c0_56 = arith.constant 0 : index
    %c5 = arith.constant 5 : index
    %c0_57 = arith.constant 0 : index
    %102 = vector.load %arg2[%c0_56, %c5, %c0_57] : memref<1x8x128xf32, #tpu.memory_space<vmem>>, vector<1x1x128xf32>
    %103 = vector.shape_cast %102 : vector<1x1x128xf32> to vector<1x128xf32>
    %c0_58 = arith.constant 0 : index
    %c5_59 = arith.constant 5 : index
    %c0_60 = arith.constant 0 : index
    %104 = vector.load %arg3[%c0_58, %c5_59, %c0_60] : memref<1x8x128xf32, #tpu.memory_space<vmem>>, vector<1x1x128xf32>
    %105 = vector.shape_cast %104 : vector<1x1x128xf32> to vector<1x128xf32>
    %c5_61 = arith.constant 5 : index
    %c0_62 = arith.constant 0 : index
    %c0_63 = arith.constant 0 : index
    %106 = vector.load %arg4[%c5_61, %c0_62, %c0_63] : memref<8x8x128xf32, #tpu.memory_space<vmem>>, vector<1x8x128xf32>
    %107 = vector.shape_cast %106 : vector<1x8x128xf32> to vector<8x128xf32>
    %c5_64 = arith.constant 5 : index
    %c0_65 = arith.constant 0 : index
    %c0_66 = arith.constant 0 : index
    %108 = vector.load %arg5[%c5_64, %c0_65, %c0_66] : memref<8x8x128xf32, #tpu.memory_space<vmem>>, vector<1x8x128xf32>
    %109 = vector.shape_cast %108 : vector<1x8x128xf32> to vector<8x128xf32>
    %110 = vector.broadcast %103 : vector<1x128xf32> to vector<8x128xf32>
    %111 = arith.mulf %110, %107 : vector<8x128xf32>
    %112 = arith.addf %95, %111 : vector<8x128xf32>
    %113 = vector.broadcast %105 : vector<1x128xf32> to vector<8x128xf32>
    %114 = arith.mulf %113, %109 : vector<8x128xf32>
    %115 = arith.subf %112, %114 : vector<8x128xf32>
    %116 = vector.broadcast %103 : vector<1x128xf32> to vector<8x128xf32>
    %117 = arith.mulf %116, %109 : vector<8x128xf32>
    %118 = arith.addf %101, %117 : vector<8x128xf32>
    %119 = vector.broadcast %105 : vector<1x128xf32> to vector<8x128xf32>
    %120 = arith.mulf %119, %107 : vector<8x128xf32>
    %121 = arith.addf %118, %120 : vector<8x128xf32>
    %c0_67 = arith.constant 0 : index
    %c6 = arith.constant 6 : index
    %c0_68 = arith.constant 0 : index
    %122 = vector.load %arg2[%c0_67, %c6, %c0_68] : memref<1x8x128xf32, #tpu.memory_space<vmem>>, vector<1x1x128xf32>
    %123 = vector.shape_cast %122 : vector<1x1x128xf32> to vector<1x128xf32>
    %c0_69 = arith.constant 0 : index
    %c6_70 = arith.constant 6 : index
    %c0_71 = arith.constant 0 : index
    %124 = vector.load %arg3[%c0_69, %c6_70, %c0_71] : memref<1x8x128xf32, #tpu.memory_space<vmem>>, vector<1x1x128xf32>
    %125 = vector.shape_cast %124 : vector<1x1x128xf32> to vector<1x128xf32>
    %c6_72 = arith.constant 6 : index
    %c0_73 = arith.constant 0 : index
    %c0_74 = arith.constant 0 : index
    %126 = vector.load %arg4[%c6_72, %c0_73, %c0_74] : memref<8x8x128xf32, #tpu.memory_space<vmem>>, vector<1x8x128xf32>
    %127 = vector.shape_cast %126 : vector<1x8x128xf32> to vector<8x128xf32>
    %c6_75 = arith.constant 6 : index
    %c0_76 = arith.constant 0 : index
    %c0_77 = arith.constant 0 : index
    %128 = vector.load %arg5[%c6_75, %c0_76, %c0_77] : memref<8x8x128xf32, #tpu.memory_space<vmem>>, vector<1x8x128xf32>
    %129 = vector.shape_cast %128 : vector<1x8x128xf32> to vector<8x128xf32>
    %130 = vector.broadcast %123 : vector<1x128xf32> to vector<8x128xf32>
    %131 = arith.mulf %130, %127 : vector<8x128xf32>
    %132 = arith.addf %115, %131 : vector<8x128xf32>
    %133 = vector.broadcast %125 : vector<1x128xf32> to vector<8x128xf32>
    %134 = arith.mulf %133, %129 : vector<8x128xf32>
    %135 = arith.subf %132, %134 : vector<8x128xf32>
    %136 = vector.broadcast %123 : vector<1x128xf32> to vector<8x128xf32>
    %137 = arith.mulf %136, %129 : vector<8x128xf32>
    %138 = arith.addf %121, %137 : vector<8x128xf32>
    %139 = vector.broadcast %125 : vector<1x128xf32> to vector<8x128xf32>
    %140 = arith.mulf %139, %127 : vector<8x128xf32>
    %141 = arith.addf %138, %140 : vector<8x128xf32>
    %c0_78 = arith.constant 0 : index
    %c7 = arith.constant 7 : index
    %c0_79 = arith.constant 0 : index
    %142 = vector.load %arg2[%c0_78, %c7, %c0_79] : memref<1x8x128xf32, #tpu.memory_space<vmem>>, vector<1x1x128xf32>
    %143 = vector.shape_cast %142 : vector<1x1x128xf32> to vector<1x128xf32>
    %c0_80 = arith.constant 0 : index
    %c7_81 = arith.constant 7 : index
    %c0_82 = arith.constant 0 : index
    %144 = vector.load %arg3[%c0_80, %c7_81, %c0_82] : memref<1x8x128xf32, #tpu.memory_space<vmem>>, vector<1x1x128xf32>
    %145 = vector.shape_cast %144 : vector<1x1x128xf32> to vector<1x128xf32>
    %c7_83 = arith.constant 7 : index
    %c0_84 = arith.constant 0 : index
    %c0_85 = arith.constant 0 : index
    %146 = vector.load %arg4[%c7_83, %c0_84, %c0_85] : memref<8x8x128xf32, #tpu.memory_space<vmem>>, vector<1x8x128xf32>
    %147 = vector.shape_cast %146 : vector<1x8x128xf32> to vector<8x128xf32>
    %c7_86 = arith.constant 7 : index
    %c0_87 = arith.constant 0 : index
    %c0_88 = arith.constant 0 : index
    %148 = vector.load %arg5[%c7_86, %c0_87, %c0_88] : memref<8x8x128xf32, #tpu.memory_space<vmem>>, vector<1x8x128xf32>
    %149 = vector.shape_cast %148 : vector<1x8x128xf32> to vector<8x128xf32>
    %150 = vector.broadcast %143 : vector<1x128xf32> to vector<8x128xf32>
    %151 = arith.mulf %150, %147 : vector<8x128xf32>
    %152 = arith.addf %135, %151 : vector<8x128xf32>
    %153 = vector.broadcast %145 : vector<1x128xf32> to vector<8x128xf32>
    %154 = arith.mulf %153, %149 : vector<8x128xf32>
    %155 = arith.subf %152, %154 : vector<8x128xf32>
    %156 = vector.broadcast %143 : vector<1x128xf32> to vector<8x128xf32>
    %157 = arith.mulf %156, %149 : vector<8x128xf32>
    %158 = arith.addf %141, %157 : vector<8x128xf32>
    %159 = vector.broadcast %145 : vector<1x128xf32> to vector<8x128xf32>
    %160 = arith.mulf %159, %147 : vector<8x128xf32>
    %161 = arith.addf %158, %160 : vector<8x128xf32>
    %c0_89 = arith.constant 0 : index
    %c0_90 = arith.constant 0 : index
    %c0_91 = arith.constant 0 : index
    %162 = vector.load %arg6[%c0_89, %c0_90, %c0_91] : memref<1x8x128xf32, #tpu.memory_space<vmem>>, vector<1x8x128xf32>
    %163 = vector.shape_cast %162 : vector<1x8x128xf32> to vector<8x128xf32>
    %164 = vector.shape_cast %155 : vector<8x128xf32> to vector<1x8x128xf32>
    tpu.vector_store %arg6[%c0_89, %c0_90, %c0_91], %164 {strides = array<i32>} : memref<1x8x128xf32, #tpu.memory_space<vmem>>, vector<1x8x128xf32>,
    %c0_92 = arith.constant 0 : index
    %c0_93 = arith.constant 0 : index
    %c0_94 = arith.constant 0 : index
    %165 = vector.load %arg7[%c0_92, %c0_93, %c0_94] : memref<1x8x128xf32, #tpu.memory_space<vmem>>, vector<1x8x128xf32>
    %166 = vector.shape_cast %165 : vector<1x8x128xf32> to vector<8x128xf32>
    %167 = vector.shape_cast %161 : vector<8x128xf32> to vector<1x8x128xf32>
    tpu.vector_store %arg7[%c0_92, %c0_93, %c0_94], %167 {strides = array<i32>} : memref<1x8x128xf32, #tpu.memory_space<vmem>>, vector<1x8x128xf32>,
    return
  }
  func.func @transform_0(%arg0: i32, %arg1: i32) -> (i32, i32, i32) {
    %c0_i32 = arith.constant 0 : i32
    %c0_i32_0 = arith.constant 0 : i32
    return %arg1, %c0_i32, %arg0 : i32, i32, i32
  }
  func.func @transform_1(%arg0: i32, %arg1: i32) -> (i32, i32, i32) {
    %c0_i32 = arith.constant 0 : i32
    %c0_i32_0 = arith.constant 0 : i32
    return %arg1, %c0_i32, %arg0 : i32, i32, i32
  }
  func.func @transform_2(%arg0: i32, %arg1: i32) -> (i32, i32, i32) {
    %c0_i32 = arith.constant 0 : i32
    %c0_i32_0 = arith.constant 0 : i32
    %c0_i32_1 = arith.constant 0 : i32
    return %c0_i32, %c0_i32_0, %arg0 : i32, i32, i32
  }
  func.func @transform_3(%arg0: i32, %arg1: i32) -> (i32, i32, i32) {
    %c0_i32 = arith.constant 0 : i32
    %c0_i32_0 = arith.constant 0 : i32
    %c0_i32_1 = arith.constant 0 : i32
    return %c0_i32, %c0_i32_0, %arg0 : i32, i32, i32
  }
  func.func @transform_4(%arg0: i32, %arg1: i32) -> (i32, i32, i32) {
    %c0_i32 = arith.constant 0 : i32
    %c0_i32_0 = arith.constant 0 : i32
    return %arg1, %c0_i32, %arg0 : i32, i32, i32
  }
  func.func @transform_5(%arg0: i32, %arg1: i32) -> (i32, i32, i32) {
    %c0_i32 = arith.constant 0 : i32
    %c0_i32_0 = arith.constant 0 : i32
    return %arg1, %c0_i32, %arg0 : i32, i32, i32
  }
}

module attributes {stable_mosaic.version = 11 : i64} {
  func.func @_spectral_mix_kernel(%arg0: i32, %arg1: i32, %arg2: memref<1x8x128xf32, #tpu.memory_space<vmem>>, %arg3: memref<1x8x128xf32, #tpu.memory_space<vmem>>, %arg4: memref<8x8x128xf32, #tpu.memory_space<vmem>>, %arg5: memref<8x8x128xf32, #tpu.memory_space<vmem>>, %arg6: memref<1x8x128xf32, #tpu.memory_space<vmem>>, %arg7: memref<1x8x128xf32, #tpu.memory_space<vmem>>) attributes {dimension_semantics = [#tpu.dimension_semantics<parallel>, #tpu.dimension_semantics<parallel>], iteration_bounds = array<i64: 1, 2>, scalar_prefetch = 0 : i64, scratch_operands = 0 : i64, tpu.core_type = #tpu.core_type<tc>, window_params = [{transform_indices = @transform_0, window_bounds = array<i64: 1, 8, 128>}, {transform_indices = @transform_1, window_bounds = array<i64: 1, 8, 128>}, {transform_indices = @transform_2, window_bounds = array<i64: 8, 8, 128>}, {transform_indices = @transform_3, window_bounds = array<i64: 8, 8, 128>}, {transform_indices = @transform_4, window_bounds = array<i64: 1, 8, 128>}, {transform_indices = @transform_5, window_bounds = array<i64: 1, 8, 128>}]} {
    %cst = arith.constant 0.000000e+00 : f32
    %0 = vector.broadcast %cst : f32 to vector<8x128xf32>
    %cst_0 = arith.constant 0.000000e+00 : f32
    %1 = vector.broadcast %cst_0 : f32 to vector<8x128xf32>
    %c0 = arith.constant 0 : index
    %c0_1 = arith.constant 0 : index
    %c0_2 = arith.constant 0 : index
    %2 = vector.load %arg2[%c0, %c0_1, %c0_2] : memref<1x8x128xf32, #tpu.memory_space<vmem>>, vector<1x1x128xf32>
    %3 = vector.shape_cast %2 : vector<1x1x128xf32> to vector<1x128xf32>
    %c0_3 = arith.constant 0 : index
    %c0_4 = arith.constant 0 : index
    %c0_5 = arith.constant 0 : index
    %4 = vector.load %arg3[%c0_3, %c0_4, %c0_5] : memref<1x8x128xf32, #tpu.memory_space<vmem>>, vector<1x1x128xf32>
    %5 = vector.shape_cast %4 : vector<1x1x128xf32> to vector<1x128xf32>
    %c0_6 = arith.constant 0 : index
    %c0_7 = arith.constant 0 : index
    %c0_8 = arith.constant 0 : index
    %6 = vector.load %arg4[%c0_6, %c0_7, %c0_8] : memref<8x8x128xf32, #tpu.memory_space<vmem>>, vector<1x8x128xf32>
    %7 = vector.shape_cast %6 : vector<1x8x128xf32> to vector<8x128xf32>
    %c0_9 = arith.constant 0 : index
    %c0_10 = arith.constant 0 : index
    %c0_11 = arith.constant 0 : index
    %8 = vector.load %arg5[%c0_9, %c0_10, %c0_11] : memref<8x8x128xf32, #tpu.memory_space<vmem>>, vector<1x8x128xf32>
    %9 = vector.shape_cast %8 : vector<1x8x128xf32> to vector<8x128xf32>
    %10 = vector.broadcast %3 : vector<1x128xf32> to vector<8x128xf32>
    %11 = arith.mulf %10, %7 : vector<8x128xf32>
    %12 = arith.addf %0, %11 : vector<8x128xf32>
    %13 = vector.broadcast %5 : vector<1x128xf32> to vector<8x128xf32>
    %14 = arith.mulf %13, %9 : vector<8x128xf32>
    %15 = arith.subf %12, %14 : vector<8x128xf32>
    %16 = vector.broadcast %3 : vector<1x128xf32> to vector<8x128xf32>
    %17 = arith.mulf %16, %9 : vector<8x128xf32>
    %18 = arith.addf %1, %17 : vector<8x128xf32>
    %19 = vector.broadcast %5 : vector<1x128xf32> to vector<8x128xf32>
    %20 = arith.mulf %19, %7 : vector<8x128xf32>
    %21 = arith.addf %18, %20 : vector<8x128xf32>
    %c0_12 = arith.constant 0 : index
    %c1 = arith.constant 1 : index
    %c0_13 = arith.constant 0 : index
    %22 = vector.load %arg2[%c0_12, %c1, %c0_13] : memref<1x8x128xf32, #tpu.memory_space<vmem>>, vector<1x1x128xf32>
    %23 = vector.shape_cast %22 : vector<1x1x128xf32> to vector<1x128xf32>
    %c0_14 = arith.constant 0 : index
    %c1_15 = arith.constant 1 : index
    %c0_16 = arith.constant 0 : index
    %24 = vector.load %arg3[%c0_14, %c1_15, %c0_16] : memref<1x8x128xf32, #tpu.memory_space<vmem>>, vector<1x1x128xf32>
    %25 = vector.shape_cast %24 : vector<1x1x128xf32> to vector<1x128xf32>
    %c1_17 = arith.constant 1 : index
    %c0_18 = arith.constant 0 : index
    %c0_19 = arith.constant 0 : index
    %26 = vector.load %arg4[%c1_17, %c0_18, %c0_19] : memref<8x8x128xf32, #tpu.memory_space<vmem>>, vector<1x8x128xf32>
    %27 = vector.shape_cast %26 : vector<1x8x128xf32> to vector<8x128xf32>
    %c1_20 = arith.constant 1 : index
    %c0_21 = arith.constant 0 : index
    %c0_22 = arith.constant 0 : index
    %28 = vector.load %arg5[%c1_20, %c0_21, %c0_22] : memref<8x8x128xf32, #tpu.memory_space<vmem>>, vector<1x8x128xf32>
    %29 = vector.shape_cast %28 : vector<1x8x128xf32> to vector<8x128xf32>
    %30 = vector.broadcast %23 : vector<1x128xf32> to vector<8x128xf32>
    %31 = arith.mulf %30, %27 : vector<8x128xf32>
    %32 = arith.addf %15, %31 : vector<8x128xf32>
    %33 = vector.broadcast %25 : vector<1x128xf32> to vector<8x128xf32>
    %34 = arith.mulf %33, %29 : vector<8x128xf32>
    %35 = arith.subf %32, %34 : vector<8x128xf32>
    %36 = vector.broadcast %23 : vector<1x128xf32> to vector<8x128xf32>
    %37 = arith.mulf %36, %29 : vector<8x128xf32>
    %38 = arith.addf %21, %37 : vector<8x128xf32>
    %39 = vector.broadcast %25 : vector<1x128xf32> to vector<8x128xf32>
    %40 = arith.mulf %39, %27 : vector<8x128xf32>
    %41 = arith.addf %38, %40 : vector<8x128xf32>
    %c0_23 = arith.constant 0 : index
    %c2 = arith.constant 2 : index
    %c0_24 = arith.constant 0 : index
    %42 = vector.load %arg2[%c0_23, %c2, %c0_24] : memref<1x8x128xf32, #tpu.memory_space<vmem>>, vector<1x1x128xf32>
    %43 = vector.shape_cast %42 : vector<1x1x128xf32> to vector<1x128xf32>
    %c0_25 = arith.constant 0 : index
    %c2_26 = arith.constant 2 : index
    %c0_27 = arith.constant 0 : index
    %44 = vector.load %arg3[%c0_25, %c2_26, %c0_27] : memref<1x8x128xf32, #tpu.memory_space<vmem>>, vector<1x1x128xf32>
    %45 = vector.shape_cast %44 : vector<1x1x128xf32> to vector<1x128xf32>
    %c2_28 = arith.constant 2 : index
    %c0_29 = arith.constant 0 : index
    %c0_30 = arith.constant 0 : index
    %46 = vector.load %arg4[%c2_28, %c0_29, %c0_30] : memref<8x8x128xf32, #tpu.memory_space<vmem>>, vector<1x8x128xf32>
    %47 = vector.shape_cast %46 : vector<1x8x128xf32> to vector<8x128xf32>
    %c2_31 = arith.constant 2 : index
    %c0_32 = arith.constant 0 : index
    %c0_33 = arith.constant 0 : index
    %48 = vector.load %arg5[%c2_31, %c0_32, %c0_33] : memref<8x8x128xf32, #tpu.memory_space<vmem>>, vector<1x8x128xf32>
    %49 = vector.shape_cast %48 : vector<1x8x128xf32> to vector<8x128xf32>
    %50 = vector.broadcast %43 : vector<1x128xf32> to vector<8x128xf32>
    %51 = arith.mulf %50, %47 : vector<8x128xf32>
    %52 = arith.addf %35, %51 : vector<8x128xf32>
    %53 = vector.broadcast %45 : vector<1x128xf32> to vector<8x128xf32>
    %54 = arith.mulf %53, %49 : vector<8x128xf32>
    %55 = arith.subf %52, %54 : vector<8x128xf32>
    %56 = vector.broadcast %43 : vector<1x128xf32> to vector<8x128xf32>
    %57 = arith.mulf %56, %49 : vector<8x128xf32>
    %58 = arith.addf %41, %57 : vector<8x128xf32>
    %59 = vector.broadcast %45 : vector<1x128xf32> to vector<8x128xf32>
    %60 = arith.mulf %59, %47 : vector<8x128xf32>
    %61 = arith.addf %58, %60 : vector<8x128xf32>
    %c0_34 = arith.constant 0 : index
    %c3 = arith.constant 3 : index
    %c0_35 = arith.constant 0 : index
    %62 = vector.load %arg2[%c0_34, %c3, %c0_35] : memref<1x8x128xf32, #tpu.memory_space<vmem>>, vector<1x1x128xf32>
    %63 = vector.shape_cast %62 : vector<1x1x128xf32> to vector<1x128xf32>
    %c0_36 = arith.constant 0 : index
    %c3_37 = arith.constant 3 : index
    %c0_38 = arith.constant 0 : index
    %64 = vector.load %arg3[%c0_36, %c3_37, %c0_38] : memref<1x8x128xf32, #tpu.memory_space<vmem>>, vector<1x1x128xf32>
    %65 = vector.shape_cast %64 : vector<1x1x128xf32> to vector<1x128xf32>
    %c3_39 = arith.constant 3 : index
    %c0_40 = arith.constant 0 : index
    %c0_41 = arith.constant 0 : index
    %66 = vector.load %arg4[%c3_39, %c0_40, %c0_41] : memref<8x8x128xf32, #tpu.memory_space<vmem>>, vector<1x8x128xf32>
    %67 = vector.shape_cast %66 : vector<1x8x128xf32> to vector<8x128xf32>
    %c3_42 = arith.constant 3 : index
    %c0_43 = arith.constant 0 : index
    %c0_44 = arith.constant 0 : index
    %68 = vector.load %arg5[%c3_42, %c0_43, %c0_44] : memref<8x8x128xf32, #tpu.memory_space<vmem>>, vector<1x8x128xf32>
    %69 = vector.shape_cast %68 : vector<1x8x128xf32> to vector<8x128xf32>
    %70 = vector.broadcast %63 : vector<1x128xf32> to vector<8x128xf32>
    %71 = arith.mulf %70, %67 : vector<8x128xf32>
    %72 = arith.addf %55, %71 : vector<8x128xf32>
    %73 = vector.broadcast %65 : vector<1x128xf32> to vector<8x128xf32>
    %74 = arith.mulf %73, %69 : vector<8x128xf32>
    %75 = arith.subf %72, %74 : vector<8x128xf32>
    %76 = vector.broadcast %63 : vector<1x128xf32> to vector<8x128xf32>
    %77 = arith.mulf %76, %69 : vector<8x128xf32>
    %78 = arith.addf %61, %77 : vector<8x128xf32>
    %79 = vector.broadcast %65 : vector<1x128xf32> to vector<8x128xf32>
    %80 = arith.mulf %79, %67 : vector<8x128xf32>
    %81 = arith.addf %78, %80 : vector<8x128xf32>
    %c0_45 = arith.constant 0 : index
    %c4 = arith.constant 4 : index
    %c0_46 = arith.constant 0 : index
    %82 = vector.load %arg2[%c0_45, %c4, %c0_46] : memref<1x8x128xf32, #tpu.memory_space<vmem>>, vector<1x1x128xf32>
    %83 = vector.shape_cast %82 : vector<1x1x128xf32> to vector<1x128xf32>
    %c0_47 = arith.constant 0 : index
    %c4_48 = arith.constant 4 : index
    %c0_49 = arith.constant 0 : index
    %84 = vector.load %arg3[%c0_47, %c4_48, %c0_49] : memref<1x8x128xf32, #tpu.memory_space<vmem>>, vector<1x1x128xf32>
    %85 = vector.shape_cast %84 : vector<1x1x128xf32> to vector<1x128xf32>
    %c4_50 = arith.constant 4 : index
    %c0_51 = arith.constant 0 : index
    %c0_52 = arith.constant 0 : index
    %86 = vector.load %arg4[%c4_50, %c0_51, %c0_52] : memref<8x8x128xf32, #tpu.memory_space<vmem>>, vector<1x8x128xf32>
    %87 = vector.shape_cast %86 : vector<1x8x128xf32> to vector<8x128xf32>
    %c4_53 = arith.constant 4 : index
    %c0_54 = arith.constant 0 : index
    %c0_55 = arith.constant 0 : index
    %88 = vector.load %arg5[%c4_53, %c0_54, %c0_55] : memref<8x8x128xf32, #tpu.memory_space<vmem>>, vector<1x8x128xf32>
    %89 = vector.shape_cast %88 : vector<1x8x128xf32> to vector<8x128xf32>
    %90 = vector.broadcast %83 : vector<1x128xf32> to vector<8x128xf32>
    %91 = arith.mulf %90, %87 : vector<8x128xf32>
    %92 = arith.addf %75, %91 : vector<8x128xf32>
    %93 = vector.broadcast %85 : vector<1x128xf32> to vector<8x128xf32>
    %94 = arith.mulf %93, %89 : vector<8x128xf32>
    %95 = arith.subf %92, %94 : vector<8x128xf32>
    %96 = vector.broadcast %83 : vector<1x128xf32> to vector<8x128xf32>
    %97 = arith.mulf %96, %89 : vector<8x128xf32>
    %98 = arith.addf %81, %97 : vector<8x128xf32>
    %99 = vector.broadcast %85 : vector<1x128xf32> to vector<8x128xf32>
    %100 = arith.mulf %99, %87 : vector<8x128xf32>
    %101 = arith.addf %98, %100 : vector<8x128xf32>
    %c0_56 = arith.constant 0 : index
    %c5 = arith.constant 5 : index
    %c0_57 = arith.constant 0 : index
    %102 = vector.load %arg2[%c0_56, %c5, %c0_57] : memref<1x8x128xf32, #tpu.memory_space<vmem>>, vector<1x1x128xf32>
    %103 = vector.shape_cast %102 : vector<1x1x128xf32> to vector<1x128xf32>
    %c0_58 = arith.constant 0 : index
    %c5_59 = arith.constant 5 : index
    %c0_60 = arith.constant 0 : index
    %104 = vector.load %arg3[%c0_58, %c5_59, %c0_60] : memref<1x8x128xf32, #tpu.memory_space<vmem>>, vector<1x1x128xf32>
    %105 = vector.shape_cast %104 : vector<1x1x128xf32> to vector<1x128xf32>
    %c5_61 = arith.constant 5 : index
    %c0_62 = arith.constant 0 : index
    %c0_63 = arith.constant 0 : index
    %106 = vector.load %arg4[%c5_61, %c0_62, %c0_63] : memref<8x8x128xf32, #tpu.memory_space<vmem>>, vector<1x8x128xf32>
    %107 = vector.shape_cast %106 : vector<1x8x128xf32> to vector<8x128xf32>
    %c5_64 = arith.constant 5 : index
    %c0_65 = arith.constant 0 : index
    %c0_66 = arith.constant 0 : index
    %108 = vector.load %arg5[%c5_64, %c0_65, %c0_66] : memref<8x8x128xf32, #tpu.memory_space<vmem>>, vector<1x8x128xf32>
    %109 = vector.shape_cast %108 : vector<1x8x128xf32> to vector<8x128xf32>
    %110 = vector.broadcast %103 : vector<1x128xf32> to vector<8x128xf32>
    %111 = arith.mulf %110, %107 : vector<8x128xf32>
    %112 = arith.addf %95, %111 : vector<8x128xf32>
    %113 = vector.broadcast %105 : vector<1x128xf32> to vector<8x128xf32>
    %114 = arith.mulf %113, %109 : vector<8x128xf32>
    %115 = arith.subf %112, %114 : vector<8x128xf32>
    %116 = vector.broadcast %103 : vector<1x128xf32> to vector<8x128xf32>
    %117 = arith.mulf %116, %109 : vector<8x128xf32>
    %118 = arith.addf %101, %117 : vector<8x128xf32>
    %119 = vector.broadcast %105 : vector<1x128xf32> to vector<8x128xf32>
    %120 = arith.mulf %119, %107 : vector<8x128xf32>
    %121 = arith.addf %118, %120 : vector<8x128xf32>
    %c0_67 = arith.constant 0 : index
    %c6 = arith.constant 6 : index
    %c0_68 = arith.constant 0 : index
    %122 = vector.load %arg2[%c0_67, %c6, %c0_68] : memref<1x8x128xf32, #tpu.memory_space<vmem>>, vector<1x1x128xf32>
    %123 = vector.shape_cast %122 : vector<1x1x128xf32> to vector<1x128xf32>
    %c0_69 = arith.constant 0 : index
    %c6_70 = arith.constant 6 : index
    %c0_71 = arith.constant 0 : index
    %124 = vector.load %arg3[%c0_69, %c6_70, %c0_71] : memref<1x8x128xf32, #tpu.memory_space<vmem>>, vector<1x1x128xf32>
    %125 = vector.shape_cast %124 : vector<1x1x128xf32> to vector<1x128xf32>
    %c6_72 = arith.constant 6 : index
    %c0_73 = arith.constant 0 : index
    %c0_74 = arith.constant 0 : index
    %126 = vector.load %arg4[%c6_72, %c0_73, %c0_74] : memref<8x8x128xf32, #tpu.memory_space<vmem>>, vector<1x8x128xf32>
    %127 = vector.shape_cast %126 : vector<1x8x128xf32> to vector<8x128xf32>
    %c6_75 = arith.constant 6 : index
    %c0_76 = arith.constant 0 : index
    %c0_77 = arith.constant 0 : index
    %128 = vector.load %arg5[%c6_75, %c0_76, %c0_77] : memref<8x8x128xf32, #tpu.memory_space<vmem>>, vector<1x8x128xf32>
    %129 = vector.shape_cast %128 : vector<1x8x128xf32> to vector<8x128xf32>
    %130 = vector.broadcast %123 : vector<1x128xf32> to vector<8x128xf32>
    %131 = arith.mulf %130, %127 : vector<8x128xf32>
    %132 = arith.addf %115, %131 : vector<8x128xf32>
    %133 = vector.broadcast %125 : vector<1x128xf32> to vector<8x128xf32>
    %134 = arith.mulf %133, %129 : vector<8x128xf32>
    %135 = arith.subf %132, %134 : vector<8x128xf32>
    %136 = vector.broadcast %123 : vector<1x128xf32> to vector<8x128xf32>
    %137 = arith.mulf %136, %129 : vector<8x128xf32>
    %138 = arith.addf %121, %137 : vector<8x128xf32>
    %139 = vector.broadcast %125 : vector<1x128xf32> to vector<8x128xf32>
    %140 = arith.mulf %139, %127 : vector<8x128xf32>
    %141 = arith.addf %138, %140 : vector<8x128xf32>
    %c0_78 = arith.constant 0 : index
    %c7 = arith.constant 7 : index
    %c0_79 = arith.constant 0 : index
    %142 = vector.load %arg2[%c0_78, %c7, %c0_79] : memref<1x8x128xf32, #tpu.memory_space<vmem>>, vector<1x1x128xf32>
    %143 = vector.shape_cast %142 : vector<1x1x128xf32> to vector<1x128xf32>
    %c0_80 = arith.constant 0 : index
    %c7_81 = arith.constant 7 : index
    %c0_82 = arith.constant 0 : index
    %144 = vector.load %arg3[%c0_80, %c7_81, %c0_82] : memref<1x8x128xf32, #tpu.memory_space<vmem>>, vector<1x1x128xf32>
    %145 = vector.shape_cast %144 : vector<1x1x128xf32> to vector<1x128xf32>
    %c7_83 = arith.constant 7 : index
    %c0_84 = arith.constant 0 : index
    %c0_85 = arith.constant 0 : index
    %146 = vector.load %arg4[%c7_83, %c0_84, %c0_85] : memref<8x8x128xf32, #tpu.memory_space<vmem>>, vector<1x8x128xf32>
    %147 = vector.shape_cast %146 : vector<1x8x128xf32> to vector<8x128xf32>
    %c7_86 = arith.constant 7 : index
    %c0_87 = arith.constant 0 : index
    %c0_88 = arith.constant 0 : index
    %148 = vector.load %arg5[%c7_86, %c0_87, %c0_88] : memref<8x8x128xf32, #tpu.memory_space<vmem>>, vector<1x8x128xf32>
    %149 = vector.shape_cast %148 : vector<1x8x128xf32> to vector<8x128xf32>
    %150 = vector.broadcast %143 : vector<1x128xf32> to vector<8x128xf32>
    %151 = arith.mulf %150, %147 : vector<8x128xf32>
    %152 = arith.addf %135, %151 : vector<8x128xf32>
    %153 = vector.broadcast %145 : vector<1x128xf32> to vector<8x128xf32>
    %154 = arith.mulf %153, %149 : vector<8x128xf32>
    %155 = arith.subf %152, %154 : vector<8x128xf32>
    %156 = vector.broadcast %143 : vector<1x128xf32> to vector<8x128xf32>
    %157 = arith.mulf %156, %149 : vector<8x128xf32>
    %158 = arith.addf %141, %157 : vector<8x128xf32>
    %159 = vector.broadcast %145 : vector<1x128xf32> to vector<8x128xf32>
    %160 = arith.mulf %159, %147 : vector<8x128xf32>
    %161 = arith.addf %158, %160 : vector<8x128xf32>
    %c0_89 = arith.constant 0 : index
    %c0_90 = arith.constant 0 : index
    %c0_91 = arith.constant 0 : index
    %162 = vector.load %arg6[%c0_89, %c0_90, %c0_91] : memref<1x8x128xf32, #tpu.memory_space<vmem>>, vector<1x8x128xf32>
    %163 = vector.shape_cast %162 : vector<1x8x128xf32> to vector<8x128xf32>
    %164 = vector.shape_cast %155 : vector<8x128xf32> to vector<1x8x128xf32>
    tpu.vector_store %arg6[%c0_89, %c0_90, %c0_91], %164 {strides = array<i32>} : memref<1x8x128xf32, #tpu.memory_space<vmem>>, vector<1x8x128xf32>,
    %c0_92 = arith.constant 0 : index
    %c0_93 = arith.constant 0 : index
    %c0_94 = arith.constant 0 : index
    %165 = vector.load %arg7[%c0_92, %c0_93, %c0_94] : memref<1x8x128xf32, #tpu.memory_space<vmem>>, vector<1x8x128xf32>
    %166 = vector.shape_cast %165 : vector<1x8x128xf32> to vector<8x128xf32>
    %167 = vector.shape_cast %161 : vector<8x128xf32> to vector<1x8x128xf32>
    tpu.vector_store %arg7[%c0_92, %c0_93, %c0_94], %167 {strides = array<i32>} : memref<1x8x128xf32, #tpu.memory_space<vmem>>, vector<1x8x128xf32>,
    return
  }
  func.func @transform_0(%arg0: i32, %arg1: i32) -> (i32, i32, i32) {
    %c0_i32 = arith.constant 0 : i32
    %c0_i32_0 = arith.constant 0 : i32
    return %arg1, %c0_i32, %arg0 : i32, i32, i32
  }
  func.func @transform_1(%arg0: i32, %arg1: i32) -> (i32, i32, i32) {
    %c0_i32 = arith.constant 0 : i32
    %c0_i32_0 = arith.constant 0 : i32
    return %arg1, %c0_i32, %arg0 : i32, i32, i32
  }
  func.func @transform_2(%arg0: i32, %arg1: i32) -> (i32, i32, i32) {
    %c0_i32 = arith.constant 0 : i32
    %c0_i32_0 = arith.constant 0 : i32
    %c0_i32_1 = arith.constant 0 : i32
    return %c0_i32, %c0_i32_0, %arg0 : i32, i32, i32
  }
  func.func @transform_3(%arg0: i32, %arg1: i32) -> (i32, i32, i32) {
    %c0_i32 = arith.constant 0 : i32
    %c0_i32_0 = arith.constant 0 : i32
    %c0_i32_1 = arith.constant 0 : i32
    return %c0_i32, %c0_i32_0, %arg0 : i32, i32, i32
  }
  func.func @transform_4(%arg0: i32, %arg1: i32) -> (i32, i32, i32) {
    %c0_i32 = arith.constant 0 : i32
    %c0_i32_0 = arith.constant 0 : i32
    return %arg1, %c0_i32, %arg0 : i32, i32, i32
  }
  func.func @transform_5(%arg0: i32, %arg1: i32) -> (i32, i32, i32) {
    %c0_i32 = arith.constant 0 : i32
    %c0_i32_0 = arith.constant 0 : i32
    return %arg1, %c0_i32, %arg0 : i32, i32, i32
  }
}

</mosaic_0001>

<llo_original>
// kernel: tpu_custom_call.1
$region0: #{tpu_custom_call.1}
  #allocation0 [shape = 'u32[]', space=smem, size = 0x4, offset = 0x4, fixed_abs, tag = 'smem constant byte address 0x4 - core index']
  #allocation1 [shape = 'u32[144,128]{1,0:T(1,128)}', space=vmem, size = 0x12000, scoped, tag = 'internal scratch']
  %s0 = inlined_call_operand.hbm [shape: f32[2,8,128], index: 0, kind: input, shape index: {}]
  %s1 = inlined_call_operand.hbm [shape: f32[2,8,128], index: 1, kind: input, shape index: {}]
  %s2 = inlined_call_operand.hbm [shape: f32[8,8,128], index: 2, kind: input, shape index: {}]
  %s3 = inlined_call_operand.hbm [shape: f32[8,8,128], index: 3, kind: input, shape index: {}]
  %s4 = inlined_call_operand.hbm [shape: f32[2,8,128], index: 4, kind: output, shape index: {0}]
  %s5 = inlined_call_operand.hbm [shape: f32[2,8,128], index: 5, kind: output, shape index: {1}]
  %6 = xla_tuple %s4, %s5
  %s7 = sld [smem:[#allocation0]]
  $region73: #{tpu_custom_call.1} parent=0
    _
  %s9 = ssub.s32 1, %s7
  %s10 = scalar_select 0, %s9, %s7
  $region1: #{tpu_custom_call.1} parent=0
    #allocation2 [shape = 'u8[8192]{0}', space=vmem, size = 0x2000, scoped, tag = 'input window, operand 0']
    #allocation3 [shape = 's32[2]{0}', space=sflag, size = 0x8, scoped, tag = 'scoped memory for tpu_custom_call.1']
    #allocation4 [shape = 's32[2]{0}', space=sflag, size = 0x8, scoped, tag = 'scoped memory for tpu_custom_call.1']
    #allocation5 [shape = 'u8[8192]{0}', space=vmem, size = 0x2000, scoped, tag = 'input window, operand 1']
    #allocation6 [shape = 's32[2]{0}', space=sflag, size = 0x8, scoped, tag = 'scoped memory for tpu_custom_call.1']
    #allocation7 [shape = 'u8[32768]{0}', space=vmem, size = 0x8000, scoped, tag = 'input window, operand 2, single buffered']
    #allocation8 [shape = 'u8[32768]{0}', space=vmem, size = 0x8000, scoped, tag = 'input window, operand 3, single buffered']
    #allocation9 [shape = 's32[1]{0}', space=sflag, size = 0x4, scoped, tag = 'scoped memory for tpu_custom_call.1']
    #allocation10 [shape = 'u8[8192]{0}', space=vmem, size = 0x2000, scoped, tag = 'output window, operand 0']
    #allocation11 [shape = 'u8[8192]{0}', space=vmem, size = 0x2000, scoped, tag = 'output window, operand 1']
    #allocation12 [shape = 's32[2]{0}', space=sflag, size = 0x8, scoped, tag = 'scoped memory for tpu_custom_call.1']
    %11 = vsyncpa [#allocation3], 0
    %s12 = scalar_lea.sflag [#allocation3], 1
    %13 = vsyncpa %s12, 0
    %14 = vsyncpa [#allocation6], 0
    %s15 = scalar_lea.sflag [#allocation6], 1
    %16 = vsyncpa %s15, 0
    %17 = vsyncpa [#allocation9], 0
    %18 = vsyncpa [#allocation4], 0
    %s19 = scalar_lea.sflag [#allocation4], 1
    %20 = vsyncpa %s19, 0
    %21 = vsyncpa [#allocation12], 0
    %s22 = scalar_lea.sflag [#allocation12], 1
    %23 = vsyncpa %s22, 0
    loop: start=0, step=1, limit=4
    $region2: #{tpu_custom_call.1} parent=1 // loop_pre_header
      _
    $region3: #{tpu_custom_call.1} parent=1 // loop_header
      %s25 = sphi 0, %s29
      %p26 = scmp.ge.s32.totalorder %s25, 4
      %s32 = sphi 0, %s44
      %s33 = sphi 0, %s40
      %s34 = sphi 0, %s32
      %s35 = sphi 0, %s33
      %s36 = sphi 0, %s34
      %s37 = sphi 0, %s35
      %s49 = sphi 0, %s51
      %s52 = sphi 0, %s49
      %s53 = sphi 0, %s52
      %s69 = sphi 0, %s53
      %s77 = sphi 0, %s79
      %s80 = sphi 0, %s77
      %s81 = sphi 0, %s80
      %s97 = sphi 0, %s81
      %s103 = sphi 0, %s105
      %s106 = sphi 0, %s103
      %s107 = sphi 0, %s106
      %s123 = sphi 0, %s107
      %s129 = sphi 0, %s131
      %s132 = sphi 0, %s129
      %s133 = sphi 0, %s132
      %s149 = sphi 0, %s133
      %s157 = sphi 0, %s159
      %s160 = sphi 0, %s157
      %s161 = sphi 0, %s160
      %s177 = sphi 0, %s161
      %s185 = sphi 0, %s187
      %s188 = sphi 0, %s185
      %s189 = sphi 0, %s188
      %s205 = sphi 0, %s189
    $region4: #{tpu_custom_call.1} parent=1 // loop_header_branch
      %28 = sbr.rel (%p26) target = $region8
    $region5: #{tpu_custom_call.1} parent=1 // loop_body
      %s30 = ssub.s32 %s25, 1
      %s31 = ssub.s32 %s25, 2
      %s38 = sadd.s32 1, %s33
      %p39 = scmp.ge.s32.totalorder %s38, 2
      %s40 = scalar_select %p39, 0, %s38
      %s41 = sadd.s32 1, %s32
      %s42 = scalar_select %p39, %s41, %s32
      %p43 = scmp.ge.s32.totalorder %s42, 1
      %s44 = scalar_select %p43, 0, %s42
      %s45 = ssub.s32 %s33, %s40
      %s46 = ssub.s32 %s32, %s44
      %s47 = sor.u32 %s45, %s46
      %p48 = scmp.eq.s32.totalorder %s47, 0
      %s50 = sadd.s32 %s49, 1
      %s51 = scalar_select %p48, %s49, %s50
      %p54 = pneg %p48
      %p55 = scmp.eq.s32.totalorder %s25, 1
      %p56 = por %p54, %p55
      %p57 = scmp.ne.s32.totalorder %s49, %s52
      %p58 = scmp.eq.s32.totalorder %s25, 0
      %p59 = por %p57, %p58
      %p60 = scmp.ne.s32.totalorder %s49, %s52
      %p61 = scmp.eq.s32.totalorder %s30, 1
      %p62 = por %p60, %p61
      %p63 = scmp.ne.s32.totalorder %s52, %s53
      %p64 = scmp.eq.s32.totalorder %s30, 0
      %p65 = por %p63, %p64
      %p66 = scmp.ne.s32.totalorder %s52, %s53
      %p67 = scmp.eq.s32.totalorder %s31, 1
      %p68 = por %p66, %p67
      %p70 = scmp.ne.s32.totalorder %s53, %s69
      %p71 = scmp.eq.s32.totalorder %s31, 0
      %p72 = por %p70, %p71
      %s73 = ssub.s32 %s33, %s40
      %s74 = ssub.s32 %s32, %s44
      %s75 = sor.u32 %s73, %s74
      %p76 = scmp.eq.s32.totalorder %s75, 0
      %s78 = sadd.s32 %s77, 1
      %s79 = scalar_select %p76, %s77, %s78
      %p82 = pneg %p76
      %p83 = scmp.eq.s32.totalorder %s25, 1
      %p84 = por %p82, %p83
      %p85 = scmp.ne.s32.totalorder %s77, %s80
      %p86 = scmp.eq.s32.totalorder %s25, 0
      %p87 = por %p85, %p86
      %p88 = scmp.ne.s32.totalorder %s77, %s80
      %p89 = scmp.eq.s32.totalorder %s30, 1
      %p90 = por %p88, %p89
      %p91 = scmp.ne.s32.totalorder %s80, %s81
      %p92 = scmp.eq.s32.totalorder %s30, 0
      %p93 = por %p91, %p92
      %p94 = scmp.ne.s32.totalorder %s80, %s81
      %p95 = scmp.eq.s32.totalorder %s31, 1
      %p96 = por %p94, %p95
      %p98 = scmp.ne.s32.totalorder %s81, %s97
      %p99 = scmp.eq.s32.totalorder %s31, 0
      %p100 = por %p98, %p99
      %s101 = ssub.s32 %s32, %s44
      %p102 = scmp.eq.s32.totalorder %s101, 0
      %s104 = sadd.s32 %s103, 1
      %s105 = scalar_select %p102, %s103, %s104
      %p108 = pneg %p102
      %p109 = scmp.eq.s32.totalorder %s25, 1
      %p110 = por %p108, %p109
      %p111 = scmp.ne.s32.totalorder %s103, %s106
      %p112 = scmp.eq.s32.totalorder %s25, 0
      %p113 = por %p111, %p112
      %p114 = scmp.ne.s32.totalorder %s103, %s106
      %p115 = scmp.eq.s32.totalorder %s30, 1
      %p116 = por %p114, %p115
      %p117 = scmp.ne.s32.totalorder %s106, %s107
      %p118 = scmp.eq.s32.totalorder %s30, 0
      %p119 = por %p117, %p118
      %p120 = scmp.ne.s32.totalorder %s106, %s107
      %p121 = scmp.eq.s32.totalorder %s31, 1
      %p122 = por %p120, %p121
      %p124 = scmp.ne.s32.totalorder %s107, %s123
      %p125 = scmp.eq.s32.totalorder %s31, 0
      %p126 = por %p124, %p125
      %s127 = ssub.s32 %s32, %s44
      %p128 = scmp.eq.s32.totalorder %s127, 0
      %s130 = sadd.s32 %s129, 1
      %s131 = scalar_select %p128, %s129, %s130
      %p134 = pneg %p128
      %p135 = scmp.eq.s32.totalorder %s25, 1
      %p136 = por %p134, %p135
      %p137 = scmp.ne.s32.totalorder %s129, %s132
      %p138 = scmp.eq.s32.totalorder %s25, 0
      %p139 = por %p137, %p138
      %p140 = scmp.ne.s32.totalorder %s129, %s132
      %p141 = scmp.eq.s32.totalorder %s30, 1
      %p142 = por %p140, %p141
      %p143 = scmp.ne.s32.totalorder %s132, %s133
      %p144 = scmp.eq.s32.totalorder %s30, 0
      %p145 = por %p143, %p144
      %p146 = scmp.ne.s32.totalorder %s132, %s133
      %p147 = scmp.eq.s32.totalorder %s31, 1
      %p148 = por %p146, %p147
      %p150 = scmp.ne.s32.totalorder %s133, %s149
      %p151 = scmp.eq.s32.totalorder %s31, 0
      %p152 = por %p150, %p151
      %s153 = ssub.s32 %s33, %s40
      %s154 = ssub.s32 %s32, %s44
      %s155 = sor.u32 %s153, %s154
      %p156 = scmp.eq.s32.totalorder %s155, 0
      %s158 = sadd.s32 %s157, 1
      %s159 = scalar_select %p156, %s157, %s158
      %p162 = pneg %p156
      %p163 = scmp.eq.s32.totalorder %s25, 1
      %p164 = por %p162, %p163
      %p165 = scmp.ne.s32.totalorder %s157, %s160
      %p166 = scmp.eq.s32.totalorder %s25, 0
      %p167 = por %p165, %p166
      %p168 = scmp.ne.s32.totalorder %s157, %s160
      %p169 = scmp.eq.s32.totalorder %s30, 1
      %p170 = por %p168, %p169
      %p171 = scmp.ne.s32.totalorder %s160, %s161
      %p172 = scmp.eq.s32.totalorder %s30, 0
      %p173 = por %p171, %p172
      %p174 = scmp.ne.s32.totalorder %s160, %s161
      %p175 = scmp.eq.s32.totalorder %s31, 1
      %p176 = por %p174, %p175
      %p178 = scmp.ne.s32.totalorder %s161, %s177
      %p179 = scmp.eq.s32.totalorder %s31, 0
      %p180 = por %p178, %p179
      %s181 = ssub.s32 %s33, %s40
      %s182 = ssub.s32 %s32, %s44
      %s183 = sor.u32 %s181, %s182
      %p184 = scmp.eq.s32.totalorder %s183, 0
      %s186 = sadd.s32 %s185, 1
      %s187 = scalar_select %p184, %s185, %s186
      %p190 = pneg %p184
      %p191 = scmp.eq.s32.totalorder %s25, 1
      %p192 = por %p190, %p191
      %p193 = scmp.ne.s32.totalorder %s185, %s188
      %p194 = scmp.eq.s32.totalorder %s25, 0
      %p195 = por %p193, %p194
      %p196 = scmp.ne.s32.totalorder %s185, %s188
      %p197 = scmp.eq.s32.totalorder %s30, 1
      %p198 = por %p196, %p197
      %p199 = scmp.ne.s32.totalorder %s188, %s189
      %p200 = scmp.eq.s32.totalorder %s30, 0
      %p201 = por %p199, %p200
      %p202 = scmp.ne.s32.totalorder %s188, %s189
      %p203 = scmp.eq.s32.totalorder %s31, 1
      %p204 = por %p202, %p203
      %p206 = scmp.ne.s32.totalorder %s189, %s205
      %p207 = scmp.eq.s32.totalorder %s31, 0
      %p208 = por %p206, %p207
      %p209 = scmp.le.s32.totalorder 1, %s25
      %p210 = scmp.lt.s32.totalorder %s25, 3
      %p211 = pnand %p209, %p210
      %p212 = pneg %p211
      // Predicated region
      $region9: #{tpu_custom_call.1} parent=5 // pred_check
        _
      $region10: #{tpu_custom_call.1} parent=5 // pred_check_branch
        %214 = sbr.rel (%p211) target = $region12
      $region11: #{tpu_custom_call.1} parent=5 // pred_region
        %s215 = ssub.s32 %s25, 1
        // Predicated region
        $region13: #{tpu_custom_call.1} parent=11 // pred_check
          %p216 = pneg %p119
        $region14: #{tpu_custom_call.1} parent=11 // pred_check_branch
          %218 = sbr.rel (%p216) target = $region16
        $region15: #{tpu_custom_call.1} parent=11 // pred_region
          %s220 = ssub.s32 1024, 1024
          %221 = vsyncadd [#allocation6], %s220
          %s222 = smul.addr %s34, 128
          %s223 = scalar_lea.hbm %s2, %s222
          %s224 = sshll.u32 [#allocation7], 4
          %s225 = int_to_ptr.vmem [resolvable:$true] %s224
          %230 = dma.hbm_to_vmem [thread:$0]  %s223, 1024, %s225, [#allocation6], 128, 128, 8
        $region16: #{tpu_custom_call.1} parent=11 // pred_fallthru
          _
        // Predicated region
        $region17: #{tpu_custom_call.1} parent=11 // pred_check
          %p231 = pneg %p145
        $region18: #{tpu_custom_call.1} parent=11 // pred_check_branch
          %233 = sbr.rel (%p231) target = $region20
        $region19: #{tpu_custom_call.1} parent=11 // pred_region
          %s235 = ssub.s32 1024, 1024
          %236 = vsyncadd [#allocation9], %s235
          %s237 = smul.addr %s34, 128
          %s238 = scalar_lea.hbm %s3, %s237
          %s239 = sshll.u32 [#allocation8], 4
          %s240 = int_to_ptr.vmem [resolvable:$true] %s239
          %245 = dma.hbm_to_vmem [thread:$0]  %s238, 1024, %s240, [#allocation9], 128, 128, 8
        $region20: #{tpu_custom_call.1} parent=11 // pred_fallthru
          _
      $region12: #{tpu_custom_call.1} parent=5 // pred_fallthru
        _
      %p246 = scmp.lt.s32.totalorder %s25, 2
      // Predicated region
      $region21: #{tpu_custom_call.1} parent=5 // pred_check
        %p247 = pneg %p246
      $region22: #{tpu_custom_call.1} parent=5 // pred_check_branch
        %249 = sbr.rel (%p247) target = $region24
      $region23: #{tpu_custom_call.1} parent=5 // pred_region
        // Predicated region
        $region25: #{tpu_custom_call.1} parent=23 // pred_check
          %p250 = pneg %p59
        $region26: #{tpu_custom_call.1} parent=23 // pred_check_branch
          %252 = sbr.rel (%p250) target = $region28
        $region27: #{tpu_custom_call.1} parent=23 // pred_region
          %s253 = sand.u32 %s49, 1
          %s254 = scalar_lea.sflag [#allocation3], %s253
          %s255 = sand.u32 %s49, 1
          %s256 = smul.addr %s255, 8
          %s257 = scalar_lea.vmem [#allocation2], %s256
          %s259 = ssub.s32 128, 128
          %260 = vsyncadd %s254, %s259
          %s261 = sadd.s32 %s32, %s33
          %s262 = smul.addr %s261, 128
          %s263 = scalar_lea.hbm %s0, %s262
          %s265 = sshll.u32 %s257, 4
          %s266 = int_to_ptr.vmem [resolvable:$true] %s265
          %268 = dma.hbm_to_vmem [thread:$0]  %s263, 128, %s266, %s254
        $region28: #{tpu_custom_call.1} parent=23 // pred_fallthru
          _
        // Predicated region
        $region29: #{tpu_custom_call.1} parent=23 // pred_check
          %p269 = pneg %p87
        $region30: #{tpu_custom_call.1} parent=23 // pred_check_branch
          %271 = sbr.rel (%p269) target = $region32
        $region31: #{tpu_custom_call.1} parent=23 // pred_region
          %s272 = sand.u32 %s25, 1
          %s273 = scalar_lea.sflag [#allocation6], %s272
          %s274 = sand.u32 %s77, 1
          %s275 = smul.addr %s274, 8
          %s276 = scalar_lea.vmem [#allocation5], %s275
          %s278 = ssub.s32 128, 128
          %279 = vsyncadd %s273, %s278
          %s280 = sadd.s32 %s32, %s33
          %s281 = smul.addr %s280, 128
          %s282 = scalar_lea.hbm %s1, %s281
          %s284 = sshll.u32 %s276, 4
          %s285 = int_to_ptr.vmem [resolvable:$true] %s284
          %287 = dma.hbm_to_vmem [thread:$0]  %s282, 128, %s285, %s273
        $region32: #{tpu_custom_call.1} parent=23 // pred_fallthru
          _
      $region24: #{tpu_custom_call.1} parent=5 // pred_fallthru
        _
      %p288 = scmp.le.s32.totalorder 1, %s25
      %p289 = scmp.lt.s32.totalorder %s25, 3
      %p290 = pnand %p288, %p289
      %p291 = pneg %p290
      // Predicated region
      $region33: #{tpu_custom_call.1} parent=5 // pred_check
        _
      $region34: #{tpu_custom_call.1} parent=5 // pred_check_branch
        %293 = sbr.rel (%p290) target = $region36
      $region35: #{tpu_custom_call.1} parent=5 // pred_region
        %s294 = ssub.s32 %s25, 1
        %s295 = sand.u32 %s52, 1
        %s296 = scalar_lea.sflag [#allocation3], %s295
        %s297 = sand.u32 %s52, 1
        %s298 = smul.addr %s297, 8
        %s299 = scalar_lea.vmem [#allocation2], %s298
        // Predicated region
        $region37: #{tpu_custom_call.1} parent=35 // pred_check
          %p300 = pneg %p65
        $region38: #{tpu_custom_call.1} parent=35 // pred_check_branch
          %302 = sbr.rel (%p300) target = $region40
        $region39: #{tpu_custom_call.1} parent=35 // pred_region
          %303 = dma.done %s296, 128
        $region40: #{tpu_custom_call.1} parent=35 // pred_fallthru
          _
        %s304 = sand.u32 %s30, 1
        %s305 = scalar_lea.sflag [#allocation6], %s304
        %s306 = sand.u32 %s80, 1
        %s307 = smul.addr %s306, 8
        %s308 = scalar_lea.vmem [#allocation5], %s307
        // Predicated region
        $region41: #{tpu_custom_call.1} parent=35 // pred_check
          %p309 = pneg %p93
        $region42: #{tpu_custom_call.1} parent=35 // pred_check_branch
          %311 = sbr.rel (%p309) target = $region44
        $region43: #{tpu_custom_call.1} parent=35 // pred_region
          %312 = dma.done %s305, 128
        $region44: #{tpu_custom_call.1} parent=35 // pred_fallthru
          _
        // Predicated region
        $region45: #{tpu_custom_call.1} parent=35 // pred_check
          %p313 = pneg %p119
        $region46: #{tpu_custom_call.1} parent=35 // pred_check_branch
          %315 = sbr.rel (%p313) target = $region48
        $region47: #{tpu_custom_call.1} parent=35 // pred_region
          %316 = dma.done [#allocation6], 1024
        $region48: #{tpu_custom_call.1} parent=35 // pred_fallthru
          _
        // Predicated region
        $region49: #{tpu_custom_call.1} parent=35 // pred_check
          %p317 = pneg %p145
        $region50: #{tpu_custom_call.1} parent=35 // pred_check_branch
          %319 = sbr.rel (%p317) target = $region52
        $region51: #{tpu_custom_call.1} parent=35 // pred_region
          %320 = dma.done [#allocation9], 1024
        $region52: #{tpu_custom_call.1} parent=35 // pred_fallthru
          _
        %s321 = sand.u32 %s52, 1
        %s322 = scalar_lea.sflag [#allocation3], %s321
        %s323 = sand.u32 %s52, 1
        %s324 = smul.addr %s323, 8
        %s325 = scalar_lea.vmem [#allocation2], %s324
        %p326 = pneg %p65
        %p327 = pneg %p62
        %s328 = sand.u32 %s30, 1
        %s329 = scalar_lea.sflag [#allocation6], %s328
        %s330 = sand.u32 %s80, 1
        %s331 = smul.addr %s330, 8
        %s332 = scalar_lea.vmem [#allocation5], %s331
        %p333 = pneg %p93
        %p334 = pneg %p90
        %p335 = pneg %p119
        %p336 = pneg %p116
        %p337 = pneg %p145
        %p338 = pneg %p142
        %p339 = pneg %p173
        %p340 = pneg %p170
        %s341 = sand.u32 %s160, 1
        %s342 = scalar_lea.sflag [#allocation4], %s341
        %s343 = sand.u32 %s160, 1
        %s344 = smul.addr %s343, 8
        %s345 = scalar_lea.vmem [#allocation10], %s344
        %p346 = pneg %p201
        %p347 = pneg %p198
        %s348 = sand.u32 %s188, 1
        %s349 = scalar_lea.sflag [#allocation12], %s348
        %s350 = sand.u32 %s188, 1
        %s351 = smul.addr %s350, 8
        %s352 = scalar_lea.vmem [#allocation11], %s351
        %v353 = vld [vmem:[%s299] sm:$0x1]
        %v354 = vld [vmem:[%s308] sm:$0x1]
        %v355 = vld [vmem:[#allocation7] sm:$0xff]
        %v356 = vld [vmem:[#allocation8] sm:$0xff]
        %v357 = vlaneseq
        %v358 = vshrl.u32 %v357, 7
        %v359 = vsub.s32 0, %v358
        %v360 = vrot.slane %v353, %v359
        %v361 = vmul.f32 %v360, %v355
        %v362 = vadd.f32 %v361, 0.0
        %v363 = vlaneseq
        %v364 = vshrl.u32 %v363, 7
        %v365 = vsub.s32 0, %v364
        %v366 = vrot.slane %v354, %v365
        %v367 = vmul.f32 %v366, %v356
        %v368 = vsub.f32 %v362, %v367
        %v369 = vmul.f32 %v360, %v356
        %v370 = vadd.f32 %v369, 0.0
        %v371 = vmul.f32 %v366, %v355
        %v372 = vadd.f32 %v370, %v371
        %v373 = vld [vmem:[%s299 + $0x1] sm:$0x1]
        %v374 = vld [vmem:[%s308 + $0x1] sm:$0x1]
        %s375 = scalar_lea.vmem [#allocation7], 8
        %v376 = vld [vmem:[%s375] sm:$0xff]
        %s377 = scalar_lea.vmem [#allocation8], 8
        %v378 = vld [vmem:[%s377] sm:$0xff]
        %v379 = vlaneseq
        %v380 = vshrl.u32 %v379, 7
        %v381 = vsub.s32 0, %v380
        %v382 = vrot.slane %v373, %v381
        %v383 = vmul.f32 %v382, %v376
        %v384 = vadd.f32 %v368, %v383
        %v385 = vlaneseq
        %v386 = vshrl.u32 %v385, 7
        %v387 = vsub.s32 0, %v386
        %v388 = vrot.slane %v374, %v387
        %v389 = vmul.f32 %v388, %v378
        %v390 = vsub.f32 %v384, %v389
        %v391 = vmul.f32 %v382, %v378
        %v392 = vadd.f32 %v372, %v391
        %v393 = vmul.f32 %v388, %v376
        %v394 = vadd.f32 %v392, %v393
        %v395 = vld [vmem:[%s299 + $0x2] sm:$0x1]
        %v396 = vld [vmem:[%s308 + $0x2] sm:$0x1]
        %s397 = scalar_lea.vmem [#allocation7], 16
        %v398 = vld [vmem:[%s397] sm:$0xff]
        %s399 = scalar_lea.vmem [#allocation8], 16
        %v400 = vld [vmem:[%s399] sm:$0xff]
        %v401 = vlaneseq
        %v402 = vshrl.u32 %v401, 7
        %v403 = vsub.s32 0, %v402
        %v404 = vrot.slane %v395, %v403
        %v405 = vmul.f32 %v404, %v398
        %v406 = vadd.f32 %v390, %v405
        %v407 = vlaneseq
        %v408 = vshrl.u32 %v407, 7
        %v409 = vsub.s32 0, %v408
        %v410 = vrot.slane %v396, %v409
        %v411 = vmul.f32 %v410, %v400
        %v412 = vsub.f32 %v406, %v411
        %v413 = vmul.f32 %v404, %v400
        %v414 = vadd.f32 %v394, %v413
        %v415 = vmul.f32 %v410, %v398
        %v416 = vadd.f32 %v414, %v415
        %v417 = vld [vmem:[%s299 + $0x3] sm:$0x1]
        %v418 = vld [vmem:[%s308 + $0x3] sm:$0x1]
        %s419 = scalar_lea.vmem [#allocation7], 24
        %v420 = vld [vmem:[%s419] sm:$0xff]
        %s421 = scalar_lea.vmem [#allocation8], 24
        %v422 = vld [vmem:[%s421] sm:$0xff]
        %v423 = vlaneseq
        %v424 = vshrl.u32 %v423, 7
        %v425 = vsub.s32 0, %v424
        %v426 = vrot.slane %v417, %v425
        %v427 = vmul.f32 %v426, %v420
        %v428 = vadd.f32 %v412, %v427
        %v429 = vlaneseq
        %v430 = vshrl.u32 %v429, 7
        %v431 = vsub.s32 0, %v430
        %v432 = vrot.slane %v418, %v431
        %v433 = vmul.f32 %v432, %v422
        %v434 = vsub.f32 %v428, %v433
        %v435 = vmul.f32 %v426, %v422
        %v436 = vadd.f32 %v416, %v435
        %v437 = vmul.f32 %v432, %v420
        %v438 = vadd.f32 %v436, %v437
        %v439 = vld [vmem:[%s299 + $0x4] sm:$0x1]
        %v440 = vld [vmem:[%s308 + $0x4] sm:$0x1]
        %s441 = scalar_lea.vmem [#allocation7], 32
        %v442 = vld [vmem:[%s441] sm:$0xff]
        %s443 = scalar_lea.vmem [#allocation8], 32
        %v444 = vld [vmem:[%s443] sm:$0xff]
        %v445 = vlaneseq
        %v446 = vshrl.u32 %v445, 7
        %v447 = vsub.s32 0, %v446
        %v448 = vrot.slane %v439, %v447
        %v449 = vmul.f32 %v448, %v442
        %v450 = vadd.f32 %v434, %v449
        %v451 = vlaneseq
        %v452 = vshrl.u32 %v451, 7
        %v453 = vsub.s32 0, %v452
        %v454 = vrot.slane %v440, %v453
        %v455 = vmul.f32 %v454, %v444
        %v456 = vsub.f32 %v450, %v455
        %v457 = vmul.f32 %v448, %v444
        %v458 = vadd.f32 %v438, %v457
        %v459 = vmul.f32 %v454, %v442
        %v460 = vadd.f32 %v458, %v459
        %v461 = vld [vmem:[%s299 + $0x5] sm:$0x1]
        %v462 = vld [vmem:[%s308 + $0x5] sm:$0x1]
        %s463 = scalar_lea.vmem [#allocation7], 40
        %v464 = vld [vmem:[%s463] sm:$0xff]
        %s465 = scalar_lea.vmem [#allocation8], 40
        %v466 = vld [vmem:[%s465] sm:$0xff]
        %v467 = vlaneseq
        %v468 = vshrl.u32 %v467, 7
        %v469 = vsub.s32 0, %v468
        %v470 = vrot.slane %v461, %v469
        %v471 = vmul.f32 %v470, %v464
        %v472 = vadd.f32 %v456, %v471
        %v473 = vlaneseq
        %v474 = vshrl.u32 %v473, 7
        %v475 = vsub.s32 0, %v474
        %v476 = vrot.slane %v462, %v475
        %v477 = vmul.f32 %v476, %v466
        %v478 = vsub.f32 %v472, %v477
        %v479 = vmul.f32 %v470, %v466
        %v480 = vadd.f32 %v460, %v479
        %v481 = vmul.f32 %v476, %v464
        %v482 = vadd.f32 %v480, %v481
        %v483 = vld [vmem:[%s299 + $0x6] sm:$0x1]
        %v484 = vld [vmem:[%s308 + $0x6] sm:$0x1]
        %s485 = scalar_lea.vmem [#allocation7], 48
        %v486 = vld [vmem:[%s485] sm:$0xff]
        %s487 = scalar_lea.vmem [#allocation8], 48
        %v488 = vld [vmem:[%s487] sm:$0xff]
        %v489 = vlaneseq
        %v490 = vshrl.u32 %v489, 7
        %v491 = vsub.s32 0, %v490
        %v492 = vrot.slane %v483, %v491
        %v493 = vmul.f32 %v492, %v486
        %v494 = vadd.f32 %v478, %v493
        %v495 = vlaneseq
        %v496 = vshrl.u32 %v495, 7
        %v497 = vsub.s32 0, %v496
        %v498 = vrot.slane %v484, %v497
        %v499 = vmul.f32 %v498, %v488
        %v500 = vsub.f32 %v494, %v499
        %v501 = vmul.f32 %v492, %v488
        %v502 = vadd.f32 %v482, %v501
        %v503 = vmul.f32 %v498, %v486
        %v504 = vadd.f32 %v502, %v503
        %v505 = vld [vmem:[%s299 + $0x7] sm:$0x1]
        %v506 = vld [vmem:[%s308 + $0x7] sm:$0x1]
        %s507 = scalar_lea.vmem [#allocation7], 56
        %v508 = vld [vmem:[%s507] sm:$0xff]
        %s509 = scalar_lea.vmem [#allocation8], 56
        %v510 = vld [vmem:[%s509] sm:$0xff]
        %v511 = vlaneseq
        %v512 = vshrl.u32 %v511, 7
        %v513 = vsub.s32 0, %v512
        %v514 = vrot.slane %v505, %v513
        %v515 = vmul.f32 %v514, %v508
        %v516 = vadd.f32 %v500, %v515
        %v517 = vlaneseq
        %v518 = vshrl.u32 %v517, 7
        %v519 = vsub.s32 0, %v518
        %v520 = vrot.slane %v506, %v519
        %v521 = vmul.f32 %v520, %v510
        %v522 = vsub.f32 %v516, %v521
        %v523 = vmul.f32 %v514, %v510
        %v524 = vadd.f32 %v504, %v523
        %v525 = vmul.f32 %v520, %v508
        %v526 = vadd.f32 %v524, %v525
        %527 = vst [vmem:[%s345] sm:$0xff] %v522
        %528 = vst [vmem:[%s352] sm:$0xff] %v526
        %s529 = sand.u32 %s160, 1
        %s530 = scalar_lea.sflag [#allocation4], %s529
        %s531 = sand.u32 %s160, 1
        %s532 = smul.addr %s531, 8
        %s533 = scalar_lea.vmem [#allocation10], %s532
        %s534 = sand.u32 %s188, 1
        %s535 = scalar_lea.sflag [#allocation12], %s534
        %s536 = sand.u32 %s188, 1
        %s537 = smul.addr %s536, 8
        %s538 = scalar_lea.vmem [#allocation11], %s537
        // Predicated region
        $region53: #{tpu_custom_call.1} parent=35 // pred_check
          %p539 = pneg %p170
        $region54: #{tpu_custom_call.1} parent=35 // pred_check_branch
          %541 = sbr.rel (%p539) target = $region56
        $region55: #{tpu_custom_call.1} parent=35 // pred_region
          %s543 = ssub.s32 128, 128
          %544 = vsyncadd %s530, %s543
          %s545 = sadd.s32 %s34, %s35
          %s546 = smul.addr %s545, 128
          %s547 = scalar_lea.hbm %s4, %s546
          %s549 = sshll.u32 %s533, 4
          %s550 = int_to_ptr.vmem [resolvable:$true] %s549
          %552 = dma.vmem_to_hbm [thread:$0]  %s550, 128, %s547, %s530
        $region56: #{tpu_custom_call.1} parent=35 // pred_fallthru
          _
        // Predicated region
        $region57: #{tpu_custom_call.1} parent=35 // pred_check
          %p553 = pneg %p198
        $region58: #{tpu_custom_call.1} parent=35 // pred_check_branch
          %555 = sbr.rel (%p553) target = $region60
        $region59: #{tpu_custom_call.1} parent=35 // pred_region
          %s557 = ssub.s32 128, 128
          %558 = vsyncadd %s535, %s557
          %s559 = sadd.s32 %s34, %s35
          %s560 = smul.addr %s559, 128
          %s561 = scalar_lea.hbm %s5, %s560
          %s563 = sshll.u32 %s538, 4
          %s564 = int_to_ptr.vmem [resolvable:$true] %s563
          %566 = dma.vmem_to_hbm [thread:$0]  %s564, 128, %s561, %s535
        $region60: #{tpu_custom_call.1} parent=35 // pred_fallthru
          _
      $region36: #{tpu_custom_call.1} parent=5 // pred_fallthru
        _
      %p567 = scmp.le.s32.totalorder 2, %s25
      // Predicated region
      $region61: #{tpu_custom_call.1} parent=5 // pred_check
        %p568 = pneg %p567
      $region62: #{tpu_custom_call.1} parent=5 // pred_check_branch
        %570 = sbr.rel (%p568) target = $region64
      $region63: #{tpu_custom_call.1} parent=5 // pred_region
        %s571 = ssub.s32 %s25, 2
        // Predicated region
        $region65: #{tpu_custom_call.1} parent=63 // pred_check
          %p572 = pneg %p176
        $region66: #{tpu_custom_call.1} parent=63 // pred_check_branch
          %574 = sbr.rel (%p572) target = $region68
        $region67: #{tpu_custom_call.1} parent=63 // pred_region
          %s575 = sand.u32 %s161, 1
          %s576 = scalar_lea.sflag [#allocation4], %s575
          %s577 = sand.u32 %s161, 1
          %s578 = smul.addr %s577, 8
          %s579 = scalar_lea.vmem [#allocation10], %s578
          %580 = dma.done %s576, 128
        $region68: #{tpu_custom_call.1} parent=63 // pred_fallthru
          _
        // Predicated region
        $region69: #{tpu_custom_call.1} parent=63 // pred_check
          %p581 = pneg %p204
        $region70: #{tpu_custom_call.1} parent=63 // pred_check_branch
          %583 = sbr.rel (%p581) target = $region72
        $region71: #{tpu_custom_call.1} parent=63 // pred_region
          %s584 = sand.u32 %s189, 1
          %s585 = scalar_lea.sflag [#allocation12], %s584
          %s586 = sand.u32 %s189, 1
          %s587 = smul.addr %s586, 8
          %s588 = scalar_lea.vmem [#allocation11], %s587
          %589 = dma.done %s585, 128
        $region72: #{tpu_custom_call.1} parent=63 // pred_fallthru
          _
      $region64: #{tpu_custom_call.1} parent=5 // pred_fallthru
        _
    $region6: #{tpu_custom_call.1} parent=1 // loop_footer
      %s29 = sadd.s32 1, %s25
    $region7: #{tpu_custom_call.1} parent=1 // loop_footer_branch
      %24 = sbr.rel target = $region3
    $region8: #{tpu_custom_call.1} parent=1 // loop_exit
      _
    %590 = vsyncpa [#allocation3], 1
    %s591 = scalar_lea.sflag [#allocation3], 1
    %592 = vsyncpa %s591, 1
    %593 = vsyncpa [#allocation6], 1
    %s594 = scalar_lea.sflag [#allocation6], 1
    %595 = vsyncpa %s594, 1
    %596 = vsyncpa [#allocation9], 1
    %597 = vsyncpa [#allocation4], 1
    %s598 = scalar_lea.sflag [#allocation4], 1
    %599 = vsyncpa %s598, 1
    %600 = vsyncpa [#allocation12], 1
    %s601 = scalar_lea.sflag [#allocation12], 1
    %602 = vsyncpa %s601, 1

// kernel: tpu_custom_call.1
$region0: #{tpu_custom_call.1}
  #allocation0 [shape = 'u32[]', space=smem, size = 0x4, offset = 0x4, fixed_abs, tag = 'smem constant byte address 0x4 - core index']
  #allocation1 [shape = 'u32[144,128]{1,0:T(1,128)}', space=vmem, size = 0x12000, scoped, tag = 'internal scratch']
  %s0 = inlined_call_operand.hbm [shape: f32[2,8,128], index: 0, kind: input, shape index: {}]
  %s1 = inlined_call_operand.hbm [shape: f32[2,8,128], index: 1, kind: input, shape index: {}]
  %s2 = inlined_call_operand.hbm [shape: f32[8,8,128], index: 2, kind: input, shape index: {}]
  %s3 = inlined_call_operand.hbm [shape: f32[8,8,128], index: 3, kind: input, shape index: {}]
  %s4 = inlined_call_operand.hbm [shape: f32[2,8,128], index: 4, kind: output, shape index: {0}]
  %s5 = inlined_call_operand.hbm [shape: f32[2,8,128], index: 5, kind: output, shape index: {1}]
  %6 = xla_tuple %s4, %s5
  %s7 = sld [smem:[#allocation0]]
  $region73: #{tpu_custom_call.1} parent=0
    _
  %s9 = ssub.s32 1, %s7
  %s10 = scalar_select 0, %s9, %s7
  $region1: #{tpu_custom_call.1} parent=0
    #allocation2 [shape = 'u8[8192]{0}', space=vmem, size = 0x2000, scoped, tag = 'input window, operand 0']
    #allocation3 [shape = 's32[2]{0}', space=sflag, size = 0x8, scoped, tag = 'scoped memory for tpu_custom_call.1']
    #allocation4 [shape = 's32[2]{0}', space=sflag, size = 0x8, scoped, tag = 'scoped memory for tpu_custom_call.1']
    #allocation5 [shape = 'u8[8192]{0}', space=vmem, size = 0x2000, scoped, tag = 'input window, operand 1']
    #allocation6 [shape = 's32[2]{0}', space=sflag, size = 0x8, scoped, tag = 'scoped memory for tpu_custom_call.1']
    #allocation7 [shape = 'u8[32768]{0}', space=vmem, size = 0x8000, scoped, tag = 'input window, operand 2, single buffered']
    #allocation8 [shape = 'u8[32768]{0}', space=vmem, size = 0x8000, scoped, tag = 'input window, operand 3, single buffered']
    #allocation9 [shape = 's32[1]{0}', space=sflag, size = 0x4, scoped, tag = 'scoped memory for tpu_custom_call.1']
    #allocation10 [shape = 'u8[8192]{0}', space=vmem, size = 0x2000, scoped, tag = 'output window, operand 0']
    #allocation11 [shape = 'u8[8192]{0}', space=vmem, size = 0x2000, scoped, tag = 'output window, operand 1']
    #allocation12 [shape = 's32[2]{0}', space=sflag, size = 0x8, scoped, tag = 'scoped memory for tpu_custom_call.1']
    %11 = vsyncpa [#allocation3], 0
    %s12 = scalar_lea.sflag [#allocation3], 1
    %13 = vsyncpa %s12, 0
    %14 = vsyncpa [#allocation6], 0
    %s15 = scalar_lea.sflag [#allocation6], 1
    %16 = vsyncpa %s15, 0
    %17 = vsyncpa [#allocation9], 0
    %18 = vsyncpa [#allocation4], 0
    %s19 = scalar_lea.sflag [#allocation4], 1
    %20 = vsyncpa %s19, 0
    %21 = vsyncpa [#allocation12], 0
    %s22 = scalar_lea.sflag [#allocation12], 1
    %23 = vsyncpa %s22, 0
    loop: start=0, step=1, limit=4
    $region2: #{tpu_custom_call.1} parent=1 // loop_pre_header
      _
    $region3: #{tpu_custom_call.1} parent=1 // loop_header
      %s25 = sphi 0, %s29
      %p26 = scmp.ge.s32.totalorder %s25, 4
      %s32 = sphi 0, %s44
      %s33 = sphi 0, %s40
      %s34 = sphi 0, %s32
      %s35 = sphi 0, %s33
      %s36 = sphi 0, %s34
      %s37 = sphi 0, %s35
      %s49 = sphi 0, %s51
      %s52 = sphi 0, %s49
      %s53 = sphi 0, %s52
      %s69 = sphi 0, %s53
      %s77 = sphi 0, %s79
      %s80 = sphi 0, %s77
      %s81 = sphi 0, %s80
      %s97 = sphi 0, %s81
      %s103 = sphi 0, %s105
      %s106 = sphi 0, %s103
      %s107 = sphi 0, %s106
      %s123 = sphi 0, %s107
      %s129 = sphi 0, %s131
      %s132 = sphi 0, %s129
      %s133 = sphi 0, %s132
      %s149 = sphi 0, %s133
      %s157 = sphi 0, %s159
      %s160 = sphi 0, %s157
      %s161 = sphi 0, %s160
      %s177 = sphi 0, %s161
      %s185 = sphi 0, %s187
      %s188 = sphi 0, %s185
      %s189 = sphi 0, %s188
      %s205 = sphi 0, %s189
    $region4: #{tpu_custom_call.1} parent=1 // loop_header_branch
      %28 = sbr.rel (%p26) target = $region8
    $region5: #{tpu_custom_call.1} parent=1 // loop_body
      %s30 = ssub.s32 %s25, 1
      %s31 = ssub.s32 %s25, 2
      %s38 = sadd.s32 1, %s33
      %p39 = scmp.ge.s32.totalorder %s38, 2
      %s40 = scalar_select %p39, 0, %s38
      %s41 = sadd.s32 1, %s32
      %s42 = scalar_select %p39, %s41, %s32
      %p43 = scmp.ge.s32.totalorder %s42, 1
      %s44 = scalar_select %p43, 0, %s42
      %s45 = ssub.s32 %s33, %s40
      %s46 = ssub.s32 %s32, %s44
      %s47 = sor.u32 %s45, %s46
      %p48 = scmp.eq.s32.totalorder %s47, 0
      %s50 = sadd.s32 %s49, 1
      %s51 = scalar_select %p48, %s49, %s50
      %p54 = pneg %p48
      %p55 = scmp.eq.s32.totalorder %s25, 1
      %p56 = por %p54, %p55
      %p57 = scmp.ne.s32.totalorder %s49, %s52
      %p58 = scmp.eq.s32.totalorder %s25, 0
      %p59 = por %p57, %p58
      %p60 = scmp.ne.s32.totalorder %s49, %s52
      %p61 = scmp.eq.s32.totalorder %s30, 1
      %p62 = por %p60, %p61
      %p63 = scmp.ne.s32.totalorder %s52, %s53
      %p64 = scmp.eq.s32.totalorder %s30, 0
      %p65 = por %p63, %p64
      %p66 = scmp.ne.s32.totalorder %s52, %s53
      %p67 = scmp.eq.s32.totalorder %s31, 1
      %p68 = por %p66, %p67
      %p70 = scmp.ne.s32.totalorder %s53, %s69
      %p71 = scmp.eq.s32.totalorder %s31, 0
      %p72 = por %p70, %p71
      %s73 = ssub.s32 %s33, %s40
      %s74 = ssub.s32 %s32, %s44
      %s75 = sor.u32 %s73, %s74
      %p76 = scmp.eq.s32.totalorder %s75, 0
      %s78 = sadd.s32 %s77, 1
      %s79 = scalar_select %p76, %s77, %s78
      %p82 = pneg %p76
      %p83 = scmp.eq.s32.totalorder %s25, 1
      %p84 = por %p82, %p83
      %p85 = scmp.ne.s32.totalorder %s77, %s80
      %p86 = scmp.eq.s32.totalorder %s25, 0
      %p87 = por %p85, %p86
      %p88 = scmp.ne.s32.totalorder %s77, %s80
      %p89 = scmp.eq.s32.totalorder %s30, 1
      %p90 = por %p88, %p89
      %p91 = scmp.ne.s32.totalorder %s80, %s81
      %p92 = scmp.eq.s32.totalorder %s30, 0
      %p93 = por %p91, %p92
      %p94 = scmp.ne.s32.totalorder %s80, %s81
      %p95 = scmp.eq.s32.totalorder %s31, 1
      %p96 = por %p94, %p95
      %p98 = scmp.ne.s32.totalorder %s81, %s97
      %p99 = scmp.eq.s32.totalorder %s31, 0
      %p100 = por %p98, %p99
      %s101 = ssub.s32 %s32, %s44
      %p102 = scmp.eq.s32.totalorder %s101, 0
      %s104 = sadd.s32 %s103, 1
      %s105 = scalar_select %p102, %s103, %s104
      %p108 = pneg %p102
      %p109 = scmp.eq.s32.totalorder %s25, 1
      %p110 = por %p108, %p109
      %p111 = scmp.ne.s32.totalorder %s103, %s106
      %p112 = scmp.eq.s32.totalorder %s25, 0
      %p113 = por %p111, %p112
      %p114 = scmp.ne.s32.totalorder %s103, %s106
      %p115 = scmp.eq.s32.totalorder %s30, 1
      %p116 = por %p114, %p115
      %p117 = scmp.ne.s32.totalorder %s106, %s107
      %p118 = scmp.eq.s32.totalorder %s30, 0
      %p119 = por %p117, %p118
      %p120 = scmp.ne.s32.totalorder %s106, %s107
      %p121 = scmp.eq.s32.totalorder %s31, 1
      %p122 = por %p120, %p121
      %p124 = scmp.ne.s32.totalorder %s107, %s123
      %p125 = scmp.eq.s32.totalorder %s31, 0
      %p126 = por %p124, %p125
      %s127 = ssub.s32 %s32, %s44
      %p128 = scmp.eq.s32.totalorder %s127, 0
      %s130 = sadd.s32 %s129, 1
      %s131 = scalar_select %p128, %s129, %s130
      %p134 = pneg %p128
      %p135 = scmp.eq.s32.totalorder %s25, 1
      %p136 = por %p134, %p135
      %p137 = scmp.ne.s32.totalorder %s129, %s132
      %p138 = scmp.eq.s32.totalorder %s25, 0
      %p139 = por %p137, %p138
      %p140 = scmp.ne.s32.totalorder %s129, %s132
      %p141 = scmp.eq.s32.totalorder %s30, 1
      %p142 = por %p140, %p141
      %p143 = scmp.ne.s32.totalorder %s132, %s133
      %p144 = scmp.eq.s32.totalorder %s30, 0
      %p145 = por %p143, %p144
      %p146 = scmp.ne.s32.totalorder %s132, %s133
      %p147 = scmp.eq.s32.totalorder %s31, 1
      %p148 = por %p146, %p147
      %p150 = scmp.ne.s32.totalorder %s133, %s149
      %p151 = scmp.eq.s32.totalorder %s31, 0
      %p152 = por %p150, %p151
      %s153 = ssub.s32 %s33, %s40
      %s154 = ssub.s32 %s32, %s44
      %s155 = sor.u32 %s153, %s154
      %p156 = scmp.eq.s32.totalorder %s155, 0
      %s158 = sadd.s32 %s157, 1
      %s159 = scalar_select %p156, %s157, %s158
      %p162 = pneg %p156
      %p163 = scmp.eq.s32.totalorder %s25, 1
      %p164 = por %p162, %p163
      %p165 = scmp.ne.s32.totalorder %s157, %s160
      %p166 = scmp.eq.s32.totalorder %s25, 0
      %p167 = por %p165, %p166
      %p168 = scmp.ne.s32.totalorder %s157, %s160
      %p169 = scmp.eq.s32.totalorder %s30, 1
      %p170 = por %p168, %p169
      %p171 = scmp.ne.s32.totalorder %s160, %s161
      %p172 = scmp.eq.s32.totalorder %s30, 0
      %p173 = por %p171, %p172
      %p174 = scmp.ne.s32.totalorder %s160, %s161
      %p175 = scmp.eq.s32.totalorder %s31, 1
      %p176 = por %p174, %p175
      %p178 = scmp.ne.s32.totalorder %s161, %s177
      %p179 = scmp.eq.s32.totalorder %s31, 0
      %p180 = por %p178, %p179
      %s181 = ssub.s32 %s33, %s40
      %s182 = ssub.s32 %s32, %s44
      %s183 = sor.u32 %s181, %s182
      %p184 = scmp.eq.s32.totalorder %s183, 0
      %s186 = sadd.s32 %s185, 1
      %s187 = scalar_select %p184, %s185, %s186
      %p190 = pneg %p184
      %p191 = scmp.eq.s32.totalorder %s25, 1
      %p192 = por %p190, %p191
      %p193 = scmp.ne.s32.totalorder %s185, %s188
      %p194 = scmp.eq.s32.totalorder %s25, 0
      %p195 = por %p193, %p194
      %p196 = scmp.ne.s32.totalorder %s185, %s188
      %p197 = scmp.eq.s32.totalorder %s30, 1
      %p198 = por %p196, %p197
      %p199 = scmp.ne.s32.totalorder %s188, %s189
      %p200 = scmp.eq.s32.totalorder %s30, 0
      %p201 = por %p199, %p200
      %p202 = scmp.ne.s32.totalorder %s188, %s189
      %p203 = scmp.eq.s32.totalorder %s31, 1
      %p204 = por %p202, %p203
      %p206 = scmp.ne.s32.totalorder %s189, %s205
      %p207 = scmp.eq.s32.totalorder %s31, 0
      %p208 = por %p206, %p207
      %p209 = scmp.le.s32.totalorder 1, %s25
      %p210 = scmp.lt.s32.totalorder %s25, 3
      %p211 = pnand %p209, %p210
      %p212 = pneg %p211
      // Predicated region
      $region9: #{tpu_custom_call.1} parent=5 // pred_check
        _
      $region10: #{tpu_custom_call.1} parent=5 // pred_check_branch
        %214 = sbr.rel (%p211) target = $region12
      $region11: #{tpu_custom_call.1} parent=5 // pred_region
        %s215 = ssub.s32 %s25, 1
        // Predicated region
        $region13: #{tpu_custom_call.1} parent=11 // pred_check
          %p216 = pneg %p119
        $region14: #{tpu_custom_call.1} parent=11 // pred_check_branch
          %218 = sbr.rel (%p216) target = $region16
        $region15: #{tpu_custom_call.1} parent=11 // pred_region
          %s220 = ssub.s32 1024, 1024
          %221 = vsyncadd [#allocation6], %s220
          %s222 = smul.addr %s34, 128
          %s223 = scalar_lea.hbm %s2, %s222
          %s224 = sshll.u32 [#allocation7], 4
          %s225 = int_to_ptr.vmem [resolvable:$true] %s224
          %230 = dma.hbm_to_vmem [thread:$0]  %s223, 1024, %s225, [#allocation6], 128, 128, 8
        $region16: #{tpu_custom_call.1} parent=11 // pred_fallthru
          _
        // Predicated region
        $region17: #{tpu_custom_call.1} parent=11 // pred_check
          %p231 = pneg %p145
        $region18: #{tpu_custom_call.1} parent=11 // pred_check_branch
          %233 = sbr.rel (%p231) target = $region20
        $region19: #{tpu_custom_call.1} parent=11 // pred_region
          %s235 = ssub.s32 1024, 1024
          %236 = vsyncadd [#allocation9], %s235
          %s237 = smul.addr %s34, 128
          %s238 = scalar_lea.hbm %s3, %s237
          %s239 = sshll.u32 [#allocation8], 4
          %s240 = int_to_ptr.vmem [resolvable:$true] %s239
          %245 = dma.hbm_to_vmem [thread:$0]  %s238, 1024, %s240, [#allocation9], 128, 128, 8
        $region20: #{tpu_custom_call.1} parent=11 // pred_fallthru
          _
      $region12: #{tpu_custom_call.1} parent=5 // pred_fallthru
        _
      %p246 = scmp.lt.s32.totalorder %s25, 2
      // Predicated region
      $region21: #{tpu_custom_call.1} parent=5 // pred_check
        %p247 = pneg %p246
      $region22: #{tpu_custom_call.1} parent=5 // pred_check_branch
        %249 = sbr.rel (%p247) target = $region24
      $region23: #{tpu_custom_call.1} parent=5 // pred_region
        // Predicated region
        $region25: #{tpu_custom_call.1} parent=23 // pred_check
          %p250 = pneg %p59
        $region26: #{tpu_custom_call.1} parent=23 // pred_check_branch
          %252 = sbr.rel (%p250) target = $region28
        $region27: #{tpu_custom_call.1} parent=23 // pred_region
          %s253 = sand.u32 %s49, 1
          %s254 = scalar_lea.sflag [#allocation3], %s253
          %s255 = sand.u32 %s49, 1
          %s256 = smul.addr %s255, 8
          %s257 = scalar_lea.vmem [#allocation2], %s256
          %s259 = ssub.s32 128, 128
          %260 = vsyncadd %s254, %s259
          %s261 = sadd.s32 %s32, %s33
          %s262 = smul.addr %s261, 128
          %s263 = scalar_lea.hbm %s0, %s262
          %s265 = sshll.u32 %s257, 4
          %s266 = int_to_ptr.vmem [resolvable:$true] %s265
          %268 = dma.hbm_to_vmem [thread:$0]  %s263, 128, %s266, %s254
        $region28: #{tpu_custom_call.1} parent=23 // pred_fallthru
          _
        // Predicated region
        $region29: #{tpu_custom_call.1} parent=23 // pred_check
          %p269 = pneg %p87
        $region30: #{tpu_custom_call.1} parent=23 // pred_check_branch
          %271 = sbr.rel (%p269) target = $region32
        $region31: #{tpu_custom_call.1} parent=23 // pred_region
          %s272 = sand.u32 %s25, 1
          %s273 = scalar_lea.sflag [#allocation6], %s272
          %s274 = sand.u32 %s77, 1
          %s275 = smul.addr %s274, 8
          %s276 = scalar_lea.vmem [#allocation5], %s275
          %s278 = ssub.s32 128, 128
          %279 = vsyncadd %s273, %s278
          %s280 = sadd.s32 %s32, %s33
          %s281 = smul.addr %s280, 128
          %s282 = scalar_lea.hbm %s1, %s281
          %s284 = sshll.u32 %s276, 4
          %s285 = int_to_ptr.vmem [resolvable:$true] %s284
          %287 = dma.hbm_to_vmem [thread:$0]  %s282, 128, %s285, %s273
        $region32: #{tpu_custom_call.1} parent=23 // pred_fallthru
          _
      $region24: #{tpu_custom_call.1} parent=5 // pred_fallthru
        _
      %p288 = scmp.le.s32.totalorder 1, %s25
      %p289 = scmp.lt.s32.totalorder %s25, 3
      %p290 = pnand %p288, %p289
      %p291 = pneg %p290
      // Predicated region
      $region33: #{tpu_custom_call.1} parent=5 // pred_check
        _
      $region34: #{tpu_custom_call.1} parent=5 // pred_check_branch
        %293 = sbr.rel (%p290) target = $region36
      $region35: #{tpu_custom_call.1} parent=5 // pred_region
        %s294 = ssub.s32 %s25, 1
        %s295 = sand.u32 %s52, 1
        %s296 = scalar_lea.sflag [#allocation3], %s295
        %s297 = sand.u32 %s52, 1
        %s298 = smul.addr %s297, 8
        %s299 = scalar_lea.vmem [#allocation2], %s298
        // Predicated region
        $region37: #{tpu_custom_call.1} parent=35 // pred_check
          %p300 = pneg %p65
        $region38: #{tpu_custom_call.1} parent=35 // pred_check_branch
          %302 = sbr.rel (%p300) target = $region40
        $region39: #{tpu_custom_call.1} parent=35 // pred_region
          %303 = dma.done %s296, 128
        $region40: #{tpu_custom_call.1} parent=35 // pred_fallthru
          _
        %s304 = sand.u32 %s30, 1
        %s305 = scalar_lea.sflag [#allocation6], %s304
        %s306 = sand.u32 %s80, 1
        %s307 = smul.addr %s306, 8
        %s308 = scalar_lea.vmem [#allocation5], %s307
        // Predicated region
        $region41: #{tpu_custom_call.1} parent=35 // pred_check
          %p309 = pneg %p93
        $region42: #{tpu_custom_call.1} parent=35 // pred_check_branch
          %311 = sbr.rel (%p309) target = $region44
        $region43: #{tpu_custom_call.1} parent=35 // pred_region
          %312 = dma.done %s305, 128
        $region44: #{tpu_custom_call.1} parent=35 // pred_fallthru
          _
        // Predicated region
        $region45: #{tpu_custom_call.1} parent=35 // pred_check
          %p313 = pneg %p119
        $region46: #{tpu_custom_call.1} parent=35 // pred_check_branch
          %315 = sbr.rel (%p313) target = $region48
        $region47: #{tpu_custom_call.1} parent=35 // pred_region
          %316 = dma.done [#allocation6], 1024
        $region48: #{tpu_custom_call.1} parent=35 // pred_fallthru
          _
        // Predicated region
        $region49: #{tpu_custom_call.1} parent=35 // pred_check
          %p317 = pneg %p145
        $region50: #{tpu_custom_call.1} parent=35 // pred_check_branch
          %319 = sbr.rel (%p317) target = $region52
        $region51: #{tpu_custom_call.1} parent=35 // pred_region
          %320 = dma.done [#allocation9], 1024
        $region52: #{tpu_custom_call.1} parent=35 // pred_fallthru
          _
        %s321 = sand.u32 %s52, 1
        %s322 = scalar_lea.sflag [#allocation3], %s321
        %s323 = sand.u32 %s52, 1
        %s324 = smul.addr %s323, 8
        %s325 = scalar_lea.vmem [#allocation2], %s324
        %p326 = pneg %p65
        %p327 = pneg %p62
        %s328 = sand.u32 %s30, 1
        %s329 = scalar_lea.sflag [#allocation6], %s328
        %s330 = sand.u32 %s80, 1
        %s331 = smul.addr %s330, 8
        %s332 = scalar_lea.vmem [#allocation5], %s331
        %p333 = pneg %p93
        %p334 = pneg %p90
        %p335 = pneg %p119
        %p336 = pneg %p116
        %p337 = pneg %p145
        %p338 = pneg %p142
        %p339 = pneg %p173
        %p340 = pneg %p170
        %s341 = sand.u32 %s160, 1
        %s342 = scalar_lea.sflag [#allocation4], %s341
        %s343 = sand.u32 %s160, 1
        %s344 = smul.addr %s343, 8
        %s345 = scalar_lea.vmem [#allocation10], %s344
        %p346 = pneg %p201
        %p347 = pneg %p198
        %s348 = sand.u32 %s188, 1
        %s349 = scalar_lea.sflag [#allocation12], %s348
        %s350 = sand.u32 %s188, 1
        %s351 = smul.addr %s350, 8
        %s352 = scalar_lea.vmem [#allocation11], %s351
        %v353 = vld [vmem:[%s299] sm:$0x1]
        %v354 = vld [vmem:[%s308] sm:$0x1]
        %v355 = vld [vmem:[#allocation7] sm:$0xff]
        %v356 = vld [vmem:[#allocation8] sm:$0xff]
        %v357 = vlaneseq
        %v358 = vshrl.u32 %v357, 7
        %v359 = vsub.s32 0, %v358
        %v360 = vrot.slane %v353, %v359
        %v361 = vmul.f32 %v360, %v355
        %v362 = vadd.f32 %v361, 0.0
        %v363 = vlaneseq
        %v364 = vshrl.u32 %v363, 7
        %v365 = vsub.s32 0, %v364
        %v366 = vrot.slane %v354, %v365
        %v367 = vmul.f32 %v366, %v356
        %v368 = vsub.f32 %v362, %v367
        %v369 = vmul.f32 %v360, %v356
        %v370 = vadd.f32 %v369, 0.0
        %v371 = vmul.f32 %v366, %v355
        %v372 = vadd.f32 %v370, %v371
        %v373 = vld [vmem:[%s299 + $0x1] sm:$0x1]
        %v374 = vld [vmem:[%s308 + $0x1] sm:$0x1]
        %s375 = scalar_lea.vmem [#allocation7], 8
        %v376 = vld [vmem:[%s375] sm:$0xff]
        %s377 = scalar_lea.vmem [#allocation8], 8
        %v378 = vld [vmem:[%s377] sm:$0xff]
        %v379 = vlaneseq
        %v380 = vshrl.u32 %v379, 7
        %v381 = vsub.s32 0, %v380
        %v382 = vrot.slane %v373, %v381
        %v383 = vmul.f32 %v382, %v376
        %v384 = vadd.f32 %v368, %v383
        %v385 = vlaneseq
        %v386 = vshrl.u32 %v385, 7
        %v387 = vsub.s32 0, %v386
        %v388 = vrot.slane %v374, %v387
        %v389 = vmul.f32 %v388, %v378
        %v390 = vsub.f32 %v384, %v389
        %v391 = vmul.f32 %v382, %v378
        %v392 = vadd.f32 %v372, %v391
        %v393 = vmul.f32 %v388, %v376
        %v394 = vadd.f32 %v392, %v393
        %v395 = vld [vmem:[%s299 + $0x2] sm:$0x1]
        %v396 = vld [vmem:[%s308 + $0x2] sm:$0x1]
        %s397 = scalar_lea.vmem [#allocation7], 16
        %v398 = vld [vmem:[%s397] sm:$0xff]
        %s399 = scalar_lea.vmem [#allocation8], 16
        %v400 = vld [vmem:[%s399] sm:$0xff]
        %v401 = vlaneseq
        %v402 = vshrl.u32 %v401, 7
        %v403 = vsub.s32 0, %v402
        %v404 = vrot.slane %v395, %v403
        %v405 = vmul.f32 %v404, %v398
        %v406 = vadd.f32 %v390, %v405
        %v407 = vlaneseq
        %v408 = vshrl.u32 %v407, 7
        %v409 = vsub.s32 0, %v408
        %v410 = vrot.slane %v396, %v409
        %v411 = vmul.f32 %v410, %v400
        %v412 = vsub.f32 %v406, %v411
        %v413 = vmul.f32 %v404, %v400
        %v414 = vadd.f32 %v394, %v413
        %v415 = vmul.f32 %v410, %v398
        %v416 = vadd.f32 %v414, %v415
        %v417 = vld [vmem:[%s299 + $0x3] sm:$0x1]
        %v418 = vld [vmem:[%s308 + $0x3] sm:$0x1]
        %s419 = scalar_lea.vmem [#allocation7], 24
        %v420 = vld [vmem:[%s419] sm:$0xff]
        %s421 = scalar_lea.vmem [#allocation8], 24
        %v422 = vld [vmem:[%s421] sm:$0xff]
        %v423 = vlaneseq
        %v424 = vshrl.u32 %v423, 7
        %v425 = vsub.s32 0, %v424
        %v426 = vrot.slane %v417, %v425
        %v427 = vmul.f32 %v426, %v420
        %v428 = vadd.f32 %v412, %v427
        %v429 = vlaneseq
        %v430 = vshrl.u32 %v429, 7
        %v431 = vsub.s32 0, %v430
        %v432 = vrot.slane %v418, %v431
        %v433 = vmul.f32 %v432, %v422
        %v434 = vsub.f32 %v428, %v433
        %v435 = vmul.f32 %v426, %v422
        %v436 = vadd.f32 %v416, %v435
        %v437 = vmul.f32 %v432, %v420
        %v438 = vadd.f32 %v436, %v437
        %v439 = vld [vmem:[%s299 + $0x4] sm:$0x1]
        %v440 = vld [vmem:[%s308 + $0x4] sm:$0x1]
        %s441 = scalar_lea.vmem [#allocation7], 32
        %v442 = vld [vmem:[%s441] sm:$0xff]
        %s443 = scalar_lea.vmem [#allocation8], 32
        %v444 = vld [vmem:[%s443] sm:$0xff]
        %v445 = vlaneseq
        %v446 = vshrl.u32 %v445, 7
        %v447 = vsub.s32 0, %v446
        %v448 = vrot.slane %v439, %v447
        %v449 = vmul.f32 %v448, %v442
        %v450 = vadd.f32 %v434, %v449
        %v451 = vlaneseq
        %v452 = vshrl.u32 %v451, 7
        %v453 = vsub.s32 0, %v452
        %v454 = vrot.slane %v440, %v453
        %v455 = vmul.f32 %v454, %v444
        %v456 = vsub.f32 %v450, %v455
        %v457 = vmul.f32 %v448, %v444
        %v458 = vadd.f32 %v438, %v457
        %v459 = vmul.f32 %v454, %v442
        %v460 = vadd.f32 %v458, %v459
        %v461 = vld [vmem:[%s299 + $0x5] sm:$0x1]
        %v462 = vld [vmem:[%s308 + $0x5] sm:$0x1]
        %s463 = scalar_lea.vmem [#allocation7], 40
        %v464 = vld [vmem:[%s463] sm:$0xff]
        %s465 = scalar_lea.vmem [#allocation8], 40
        %v466 = vld [vmem:[%s465] sm:$0xff]
        %v467 = vlaneseq
        %v468 = vshrl.u32 %v467, 7
        %v469 = vsub.s32 0, %v468
        %v470 = vrot.slane %v461, %v469
        %v471 = vmul.f32 %v470, %v464
        %v472 = vadd.f32 %v456, %v471
        %v473 = vlaneseq
        %v474 = vshrl.u32 %v473, 7
        %v475 = vsub.s32 0, %v474
        %v476 = vrot.slane %v462, %v475
        %v477 = vmul.f32 %v476, %v466
        %v478 = vsub.f32 %v472, %v477
        %v479 = vmul.f32 %v470, %v466
        %v480 = vadd.f32 %v460, %v479
        %v481 = vmul.f32 %v476, %v464
        %v482 = vadd.f32 %v480, %v481
        %v483 = vld [vmem:[%s299 + $0x6] sm:$0x1]
        %v484 = vld [vmem:[%s308 + $0x6] sm:$0x1]
        %s485 = scalar_lea.vmem [#allocation7], 48
        %v486 = vld [vmem:[%s485] sm:$0xff]
        %s487 = scalar_lea.vmem [#allocation8], 48
        %v488 = vld [vmem:[%s487] sm:$0xff]
        %v489 = vlaneseq
        %v490 = vshrl.u32 %v489, 7
        %v491 = vsub.s32 0, %v490
        %v492 = vrot.slane %v483, %v491
        %v493 = vmul.f32 %v492, %v486
        %v494 = vadd.f32 %v478, %v493
        %v495 = vlaneseq
        %v496 = vshrl.u32 %v495, 7
        %v497 = vsub.s32 0, %v496
        %v498 = vrot.slane %v484, %v497
        %v499 = vmul.f32 %v498, %v488
        %v500 = vsub.f32 %v494, %v499
        %v501 = vmul.f32 %v492, %v488
        %v502 = vadd.f32 %v482, %v501
        %v503 = vmul.f32 %v498, %v486
        %v504 = vadd.f32 %v502, %v503
        %v505 = vld [vmem:[%s299 + $0x7] sm:$0x1]
        %v506 = vld [vmem:[%s308 + $0x7] sm:$0x1]
        %s507 = scalar_lea.vmem [#allocation7], 56
        %v508 = vld [vmem:[%s507] sm:$0xff]
        %s509 = scalar_lea.vmem [#allocation8], 56
        %v510 = vld [vmem:[%s509] sm:$0xff]
        %v511 = vlaneseq
        %v512 = vshrl.u32 %v511, 7
        %v513 = vsub.s32 0, %v512
        %v514 = vrot.slane %v505, %v513
        %v515 = vmul.f32 %v514, %v508
        %v516 = vadd.f32 %v500, %v515
        %v517 = vlaneseq
        %v518 = vshrl.u32 %v517, 7
        %v519 = vsub.s32 0, %v518
        %v520 = vrot.slane %v506, %v519
        %v521 = vmul.f32 %v520, %v510
        %v522 = vsub.f32 %v516, %v521
        %v523 = vmul.f32 %v514, %v510
        %v524 = vadd.f32 %v504, %v523
        %v525 = vmul.f32 %v520, %v508
        %v526 = vadd.f32 %v524, %v525
        %527 = vst [vmem:[%s345] sm:$0xff] %v522
        %528 = vst [vmem:[%s352] sm:$0xff] %v526
        %s529 = sand.u32 %s160, 1
        %s530 = scalar_lea.sflag [#allocation4], %s529
        %s531 = sand.u32 %s160, 1
        %s532 = smul.addr %s531, 8
        %s533 = scalar_lea.vmem [#allocation10], %s532
        %s534 = sand.u32 %s188, 1
        %s535 = scalar_lea.sflag [#allocation12], %s534
        %s536 = sand.u32 %s188, 1
        %s537 = smul.addr %s536, 8
        %s538 = scalar_lea.vmem [#allocation11], %s537
        // Predicated region
        $region53: #{tpu_custom_call.1} parent=35 // pred_check
          %p539 = pneg %p170
        $region54: #{tpu_custom_call.1} parent=35 // pred_check_branch
          %541 = sbr.rel (%p539) target = $region56
        $region55: #{tpu_custom_call.1} parent=35 // pred_region
          %s543 = ssub.s32 128, 128
          %544 = vsyncadd %s530, %s543
          %s545 = sadd.s32 %s34, %s35
          %s546 = smul.addr %s545, 128
          %s547 = scalar_lea.hbm %s4, %s546
          %s549 = sshll.u32 %s533, 4
          %s550 = int_to_ptr.vmem [resolvable:$true] %s549
          %552 = dma.vmem_to_hbm [thread:$0]  %s550, 128, %s547, %s530
        $region56: #{tpu_custom_call.1} parent=35 // pred_fallthru
          _
        // Predicated region
        $region57: #{tpu_custom_call.1} parent=35 // pred_check
          %p553 = pneg %p198
        $region58: #{tpu_custom_call.1} parent=35 // pred_check_branch
          %555 = sbr.rel (%p553) target = $region60
        $region59: #{tpu_custom_call.1} parent=35 // pred_region
          %s557 = ssub.s32 128, 128
          %558 = vsyncadd %s535, %s557
          %s559 = sadd.s32 %s34, %s35
          %s560 = smul.addr %s559, 128
          %s561 = scalar_lea.hbm %s5, %s560
          %s563 = sshll.u32 %s538, 4
          %s564 = int_to_ptr.vmem [resolvable:$true] %s563
          %566 = dma.vmem_to_hbm [thread:$0]  %s564, 128, %s561, %s535
        $region60: #{tpu_custom_call.1} parent=35 // pred_fallthru
          _
      $region36: #{tpu_custom_call.1} parent=5 // pred_fallthru
        _
      %p567 = scmp.le.s32.totalorder 2, %s25
      // Predicated region
      $region61: #{tpu_custom_call.1} parent=5 // pred_check
        %p568 = pneg %p567
      $region62: #{tpu_custom_call.1} parent=5 // pred_check_branch
        %570 = sbr.rel (%p568) target = $region64
      $region63: #{tpu_custom_call.1} parent=5 // pred_region
        %s571 = ssub.s32 %s25, 2
        // Predicated region
        $region65: #{tpu_custom_call.1} parent=63 // pred_check
          %p572 = pneg %p176
        $region66: #{tpu_custom_call.1} parent=63 // pred_check_branch
          %574 = sbr.rel (%p572) target = $region68
        $region67: #{tpu_custom_call.1} parent=63 // pred_region
          %s575 = sand.u32 %s161, 1
          %s576 = scalar_lea.sflag [#allocation4], %s575
          %s577 = sand.u32 %s161, 1
          %s578 = smul.addr %s577, 8
          %s579 = scalar_lea.vmem [#allocation10], %s578
          %580 = dma.done %s576, 128
        $region68: #{tpu_custom_call.1} parent=63 // pred_fallthru
          _
        // Predicated region
        $region69: #{tpu_custom_call.1} parent=63 // pred_check
          %p581 = pneg %p204
        $region70: #{tpu_custom_call.1} parent=63 // pred_check_branch
          %583 = sbr.rel (%p581) target = $region72
        $region71: #{tpu_custom_call.1} parent=63 // pred_region
          %s584 = sand.u32 %s189, 1
          %s585 = scalar_lea.sflag [#allocation12], %s584
          %s586 = sand.u32 %s189, 1
          %s587 = smul.addr %s586, 8
          %s588 = scalar_lea.vmem [#allocation11], %s587
          %589 = dma.done %s585, 128
        $region72: #{tpu_custom_call.1} parent=63 // pred_fallthru
          _
      $region64: #{tpu_custom_call.1} parent=5 // pred_fallthru
        _
    $region6: #{tpu_custom_call.1} parent=1 // loop_footer
      %s29 = sadd.s32 1, %s25
    $region7: #{tpu_custom_call.1} parent=1 // loop_footer_branch
      %24 = sbr.rel target = $region3
    $region8: #{tpu_custom_call.1} parent=1 // loop_exit
      _
    %590 = vsyncpa [#allocation3], 1
    %s591 = scalar_lea.sflag [#allocation3], 1
    %592 = vsyncpa %s591, 1
    %593 = vsyncpa [#allocation6], 1
    %s594 = scalar_lea.sflag [#allocation6], 1
    %595 = vsyncpa %s594, 1
    %596 = vsyncpa [#allocation9], 1
    %597 = vsyncpa [#allocation4], 1
    %s598 = scalar_lea.sflag [#allocation4], 1
    %599 = vsyncpa %s598, 1
    %600 = vsyncpa [#allocation12], 1
    %s601 = scalar_lea.sflag [#allocation12], 1
    %602 = vsyncpa %s601, 1

</llo_original>
